<compile_context>
chip_gen: v5e
topology: v5e:2x2
jax: 0.10.0
libtpu: 0.0.40
codegen_flags: <defaults>
</compile_context>

<pallas_src>
import math
import functools

import jax
import jax.numpy as jnp
import numpy as np
from jax import lax
from jax.experimental import pallas as pl
from jax.experimental.pallas import tpu as pltpu

_NEG = -1e9  # finite "-inf": fully-masked padded rows stay NaN-free


def _head_group(heads: int, head_dim: int) -> int:
    """Number of heads per lane-aligned group (group width == 128 when possible)."""
    if head_dim >= 128 or 128 % head_dim != 0:
        return 1
    hg = min(heads, 128 // head_dim)
    while heads % hg:
        hg -= 1
    return max(hg, 1)


def _clip_attn_kernel(x_ref, wqkv_ref, bqkv_ref, wo_ref, bo_ref, mask_ref,
                      out_ref, qkv_ref, attn_ref, *,
                      heads: int, block_batch: int, seq_pad: int):
    """One batch block (Bt elements) per grid step; everything resident in VMEM.

    x_ref    : (Bt*Sp, E)  bf16
    wqkv_ref : (E, 3E)     bf16   [wq.T*scale | wk.T | wv.T]
    bqkv_ref : (1, 3E)     f32    [bq*scale   | bk   | bv  ]
    wo_ref   : (E, E)      bf16   wo.T
    bo_ref   : (1, E)      f32
    mask_ref : (Sp, Sp)    f32    additive mask (padded keys = -1e9)
    out_ref  : (Bt*Sp, E)  x.dtype
    qkv_ref  : (Bt*Sp, 3E) bf16   VMEM scratch (bounds live ranges across heads)
    attn_ref : (Bt*Sp, E)  bf16   VMEM scratch (concat-free head writeback)
    """
    Bt, Sp = block_batch, seq_pad
    E = x_ref.shape[-1]
    D = E // heads
    hg = _head_group(heads, D)          # heads per lane-aligned group
    GW = hg * D                         # group width in lanes

    # Fused Q/K/V projection: one wide bf16 MXU matmul over all Bt*Sp rows,
    # f32 accumulation, cast to bf16 once and parked in VMEM scratch.
    qkv = jnp.dot(x_ref[...], wqkv_ref[...], preferred_element_type=jnp.float32)
    qkv_ref[...] = (qkv + bqkv_ref[...]).astype(jnp.bfloat16)

    # Per-(batch, head) attention.  Scores/softmax in f32 (bf16 MXU operands);
    # normalization deferred until after p@v (scales (Sp, D) instead of (Sp, Sp)).
    for b in range(Bt):
        rows = slice(b * Sp, (b + 1) * Sp)
        for g in range(heads // hg):
            c0 = g * GW
            q_slab = qkv_ref[rows, c0:c0 + GW]                      # (Sp, GW) bf16
            k_slab = qkv_ref[rows, E + c0:E + c0 + GW]
            v_slab = qkv_ref[rows, 2 * E + c0:2 * E + c0 + GW]

            parts = []
            for j in range(hg):
                qh = q_slab[:, j * D:(j + 1) * D]                   # (Sp, D) bf16
                kh = k_slab[:, j * D:(j + 1) * D]
                vh = v_slab[:, j * D:(j + 1) * D]

                # q @ k^T without materializing a transpose (contract last dims);
                # bf16 operands, f32 accumulation.  1/sqrt(D) already folded in.
                s = lax.dot_general(qh, kh, (((1,), (1,)), ((), ())),
                                    preferred_element_type=jnp.float32)
                s = s + mask_ref[...]                               # (Sp, Sp) f32
                s_max = jnp.max(s, axis=-1, keepdims=True)
                p = jnp.exp(s - s_max)
                inv = pl.reciprocal(jnp.sum(p, axis=-1, keepdims=True),
                                    approx=True)                    # (Sp, 1) EUP
                oh = jnp.dot(p.astype(jnp.bfloat16), vh,
                             preferred_element_type=jnp.float32) * inv
                parts.append(oh.astype(jnp.bfloat16))

            # One lane-aligned (Sp, GW) store per group (no masked partial stores
            # when GW == 128, e.g. CLIP head pairs with D=64).
            slab = parts[0] if hg == 1 else jnp.concatenate(parts, axis=-1)
            attn_ref[rows, c0:c0 + GW] = slab

    # Output projection over the full, lane-dense (Bt*Sp, E) slab.
    y = jnp.dot(attn_ref[...], wo_ref[...], preferred_element_type=jnp.float32)
    out_ref[...] = (y + bo_ref[...]).astype(out_ref.dtype)


def _vmem_limit_bytes() -> int:
    """~75% of this chip's VMEM (v5e/v6e: ~96 MiB, v7x: ~48 MiB)."""
    try:
        return int(pltpu.get_tpu_info().vmem_capacity_bytes * 3 // 4)
    except Exception:
        return 64 * 1024 * 1024


def _pick_block_batch(B: int, cap: int = 8) -> int:
    """Largest divisor of B <= cap, preferring >= 2 grid steps (v7x: 2 TCs)."""
    divisors = [d for d in range(1, min(B, cap) + 1) if B % d == 0]
    good = [d for d in divisors if B // d >= 2]
    return max(good) if good else max(divisors)


def clip_attention(x, params, heads, mask=None):
    """x: (B, S, E). params: PyTorch Linear convention (W is (out,in); y = x@W.T+b)."""
    B, S, E = x.shape
    assert E % heads == 0
    D = E // heads
    scale = 1.0 / math.sqrt(D)

    # Lane-dense sequence padding (e.g. CLIP text S=77 -> 128).
    Sp = ((S + 127) // 128) * 128
    # Batch block per grid step (cap 8 keeps resident VMEM safe on v7x's 64 MiB).
    Bt = _pick_block_batch(B)

    # Fused, pre-transposed QKV weight with the attention scale folded into q; bf16.
    wqkv_t = jnp.concatenate(
        [params["wq"].T * scale, params["wk"].T, params["wv"].T],
        axis=1).astype(jnp.bfloat16)                           # (E, 3E)
    bqkv = jnp.concatenate(
        [params["bq"] * scale, params["bk"], params["bv"]]
    ).reshape(1, 3 * E).astype(jnp.float32)                    # (1, 3E)
    wo_t = params["wo"].T.astype(jnp.bfloat16)                 # (E, E)
    bo = params["bo"].reshape(1, E).astype(jnp.float32)        # (1, E)

    # Pad x along S (zeros), present it as a lane-dense 2D (B*Sp, E) slab, and
    # build the padded additive mask (padded keys -> -1e9).
    x_p = jnp.zeros((B, Sp, E), jnp.bfloat16).at[:, :S, :].set(x.astype(jnp.bfloat16))
    x_2d = x_p.reshape(B * Sp, E)
    # TODO(synk): per-sample (B,1,S,S) attention masks would need a (B,Sp,Sp)
    # input with a per-step index_map; the module's shared (S,S)/None mask is
    # what is implemented here.
    valid = mask if mask is not None else jnp.zeros((S, S), jnp.float32)
    mask_p = jnp.full((Sp, Sp), _NEG, jnp.float32).at[:S, :S].set(
        valid.astype(jnp.float32))

    # Constant-across-the-grid operands: single-buffered (their index_map never
    # changes, so double-buffering would only double resident VMEM -- v7x critical).
    def const_spec(shape):
        return pl.BlockSpec(shape, lambda b: (0,) * len(shape),
                            pipeline_mode=pl.Buffered(1))

    flops = B * (2 * Sp * E * 3 * E        # fused qkv projection
                 + 4 * Sp * Sp * E         # scores + p@v over all heads
                 + 2 * Sp * E * E)         # out projection
    bytes_accessed = int(x_2d.size * 2 + wqkv_t.size * 2 + wo_t.size * 2
                         + bqkv.size * 4 + bo.size * 4 + mask_p.size * 4
                         + B * Sp * E * x.dtype.itemsize)
    cost = pl.CostEstimate(flops=int(flops),
                           transcendentals=int(B * heads * Sp * Sp),
                           bytes_accessed=bytes_accessed)

    kernel = functools.partial(_clip_attn_kernel, heads=heads,
                               block_batch=Bt, seq_pad=Sp)

    out_2d = pl.pallas_call(
        kernel,
        out_shape=jax.ShapeDtypeStruct((B * Sp, E), x.dtype),
        grid_spec=pltpu.PrefetchScalarGridSpec(
            num_scalar_prefetch=0,
            grid=(B // Bt,),
            in_specs=[
                pl.BlockSpec((Bt * Sp, E), lambda b: (b, 0)),    # x (pipelined)
                const_spec((E, 3 * E)),                          # fused wqkv
                const_spec((1, 3 * E)),                          # fused bqkv
                const_spec((E, E)),                              # wo
                const_spec((1, E)),                              # bo
                const_spec((Sp, Sp)),                            # mask
            ],
            out_specs=pl.BlockSpec((Bt * Sp, E), lambda b: (b, 0)),
            scratch_shapes=[
                pltpu.VMEM((Bt * Sp, 3 * E), jnp.bfloat16),      # qkv scratch
                pltpu.VMEM((Bt * Sp, E), jnp.bfloat16),          # attn scratch
            ],
        ),
        compiler_params=pltpu.CompilerParams(
            dimension_semantics=("parallel",),
            vmem_limit_bytes=_vmem_limit_bytes()),
        cost_estimate=cost,
    )(x_2d, wqkv_t, bqkv, wo_t, bo, mask_p)

    return out_2d.reshape(B, Sp, E)[:, :S, :]


def _reference(x, params, heads, mask=None):
    """Plain-JAX f32 reference mirroring the PyTorch forward."""
    B, S, E = x.shape
    D = E // heads
    q = x @ params["wq"].T + params["bq"]
    k = x @ params["wk"].T + params["bk"]
    v = x @ params["wv"].T + params["bv"]

    def split(t):  # (B,S,E) -> (B,H,S,D)
        return t.reshape(B, S, heads, D).transpose(0, 2, 1, 3)

    qh, kh, vh = split(q), split(k), split(v)
    s = jnp.einsum("bhqd,bhkd->bhqk", qh, kh) / math.sqrt(D)
    if mask is not None:
        s = s + mask[None, None]
    p = jax.nn.softmax(s, axis=-1)
    o = jnp.einsum("bhqk,bhkd->bhqd", p, vh)
    o = o.transpose(0, 2, 1, 3).reshape(B, S, E)
    return o @ params["wo"].T + params["bo"]


if __name__ == "__main__":
    B, S, E, H = 2, 8, 32, 4

    key = jax.random.PRNGKey(0)
    keys = jax.random.split(key, 10)
    wscale = 1.0 / math.sqrt(E)
    params = {
        "wq": jax.random.normal(keys[0], (E, E), jnp.float32) * wscale,
        "bq": jax.random.normal(keys[1], (E,), jnp.float32) * 0.01,
        "wk": jax.random.normal(keys[2], (E, E), jnp.float32) * wscale,
        "bk": jax.random.normal(keys[3], (E,), jnp.float32) * 0.01,
        "wv": jax.random.normal(keys[4], (E, E), jnp.float32) * wscale,
        "bv": jax.random.normal(keys[5], (E,), jnp.float32) * 0.01,
        "wo": jax.random.normal(keys[6], (E, E), jnp.float32) * wscale,
        "bo": jax.random.normal(keys[7], (E,), jnp.float32) * 0.01,
    }
    x = jax.random.normal(keys[8], (B, S, E), jnp.float32)

    # Causal-style additive mask (as the CLIP text encoder uses), broadcast over B, H.
    mask = jnp.where(jnp.tril(jnp.ones((S, S), dtype=bool)), 0.0, -1e9)
    mask = mask.astype(jnp.float32)

    out = clip_attention(x, params, H, mask)
    out = jax.block_until_ready(out)

    ref = _reference(x, params, H, mask)
    # bf16 MXU paths (projections, scores, p@v, out-proj) + approx reciprocal give
    # ~1e-2-level agreement with the f32 reference; tolerance includes margin.
    np.testing.assert_allclose(np.asarray(out), np.asarray(ref), rtol=5e-2, atol=5e-2)

    print("KERNEL_OK")
</pallas_src>

<mosaic_0001>
module attributes {stable_mosaic.version = 11 : i64} {
  func.func @_clip_attn_kernel(%arg0: i32, %arg1: memref<128x32xbf16, #tpu.memory_space<vmem>>, %arg2: memref<32x96xbf16, #tpu.memory_space<vmem>>, %arg3: memref<1x96xf32, #tpu.memory_space<vmem>>, %arg4: memref<32x32xbf16, #tpu.memory_space<vmem>>, %arg5: memref<1x32xf32, #tpu.memory_space<vmem>>, %arg6: memref<128x128xf32, #tpu.memory_space<vmem>>, %arg7: memref<128x32xf32, #tpu.memory_space<vmem>>, %arg8: memref<128x96xbf16, #tpu.memory_space<vmem>>, %arg9: memref<128x32xbf16, #tpu.memory_space<vmem>>) attributes {dimension_semantics = [#tpu.dimension_semantics<parallel>], iteration_bounds = array<i64: 2>, scalar_prefetch = 0 : i64, scratch_operands = 2 : i64, tpu.core_type = #tpu.core_type<tc>, window_params = [{transform_indices = @transform_0, window_bounds = array<i64: 128, 32>}, {pipeline_mode = #tpu.pipeline_mode<synchronous>, transform_indices = @transform_1, window_bounds = array<i64: 32, 96>}, {pipeline_mode = #tpu.pipeline_mode<synchronous>, transform_indices = @transform_2, window_bounds = array<i64: 1, 96>}, {pipeline_mode = #tpu.pipeline_mode<synchronous>, transform_indices = @transform_3, window_bounds = array<i64: 32, 32>}, {pipeline_mode = #tpu.pipeline_mode<synchronous>, transform_indices = @transform_4, window_bounds = array<i64: 1, 32>}, {pipeline_mode = #tpu.pipeline_mode<synchronous>, transform_indices = @transform_5, window_bounds = array<i64: 128, 128>}, {transform_indices = @transform_6, window_bounds = array<i64: 128, 32>}]} {
    %c0 = arith.constant 0 : index
    %c0_0 = arith.constant 0 : index
    %0 = vector.load %arg1[%c0, %c0_0] : memref<128x32xbf16, #tpu.memory_space<vmem>>, vector<128x32xbf16>
    %c0_1 = arith.constant 0 : index
    %c0_2 = arith.constant 0 : index
    %1 = vector.load %arg2[%c0_1, %c0_2] : memref<32x96xbf16, #tpu.memory_space<vmem>>, vector<32x96xbf16>
    %cst = arith.constant dense<0.000000e+00> : vector<128x96xf32>
    %2 = tpu.matmul %0, %1, %cst {dimension_numbers = #tpu.dot_dimension_numbers<[1], [0], [0], [1], [0, 0, 1, 1], [], []>} : vector<128x32xbf16>, vector<32x96xbf16>, vector<128x96xf32> -> vector<128x96xf32>
    %c0_3 = arith.constant 0 : index
    %c0_4 = arith.constant 0 : index
    %3 = vector.load %arg3[%c0_3, %c0_4] : memref<1x96xf32, #tpu.memory_space<vmem>>, vector<1x96xf32>
    %4 = vector.broadcast %3 : vector<1x96xf32> to vector<128x96xf32>
    %5 = arith.addf %2, %4 : vector<128x96xf32>
    %6 = arith.truncf %5 : vector<128x96xf32> to vector<128x96xbf16>
    %c0_5 = arith.constant 0 : index
    %c0_6 = arith.constant 0 : index
    %7 = vector.load %arg8[%c0_5, %c0_6] : memref<128x96xbf16, #tpu.memory_space<vmem>>, vector<128x96xbf16>
    tpu.vector_store %arg8[%c0_5, %c0_6], %6 {strides = array<i32>} : memref<128x96xbf16, #tpu.memory_space<vmem>>, vector<128x96xbf16>,
    %c0_7 = arith.constant 0 : index
    %c0_8 = arith.constant 0 : index
    %8 = vector.load %arg8[%c0_7, %c0_8] : memref<128x96xbf16, #tpu.memory_space<vmem>>, vector<128x32xbf16>
    %c0_9 = arith.constant 0 : index
    %c32 = arith.constant 32 : index
    %9 = vector.load %arg8[%c0_9, %c32] : memref<128x96xbf16, #tpu.memory_space<vmem>>, vector<128x32xbf16>
    %c0_10 = arith.constant 0 : index
    %c64 = arith.constant 64 : index
    %10 = vector.load %arg8[%c0_10, %c64] : memref<128x96xbf16, #tpu.memory_space<vmem>>, vector<128x32xbf16>
    %11 = vector.extract_strided_slice %8 {offsets = [0, 0], sizes = [128, 8], strides = [1, 1]} : vector<128x32xbf16> to vector<128x8xbf16>
    %12 = vector.extract_strided_slice %9 {offsets = [0, 0], sizes = [128, 8], strides = [1, 1]} : vector<128x32xbf16> to vector<128x8xbf16>
    %13 = vector.extract_strided_slice %10 {offsets = [0, 0], sizes = [128, 8], strides = [1, 1]} : vector<128x32xbf16> to vector<128x8xbf16>
    %cst_11 = arith.constant dense<0.000000e+00> : vector<128x128xf32>
    %14 = tpu.matmul %11, %12, %cst_11 {dimension_numbers = #tpu.dot_dimension_numbers<[1], [1], [0], [0], [0, 0, 1, 0], [], []>} : vector<128x8xbf16>, vector<128x8xbf16>, vector<128x128xf32> -> vector<128x128xf32>
    %c0_12 = arith.constant 0 : index
    %c0_13 = arith.constant 0 : index
    %15 = vector.load %arg6[%c0_12, %c0_13] : memref<128x128xf32, #tpu.memory_space<vmem>>, vector<128x128xf32>
    %16 = arith.addf %14, %15 : vector<128x128xf32>
    %cst_14 = arith.constant dense<0xFF800000> : vector<128xf32>
    %17 = vector.multi_reduction <maximumf>, %16, %cst_14 [1] : vector<128x128xf32> to vector<128xf32>
    %18 = vector.shape_cast %17 : vector<128xf32> to vector<128x1xf32>
    %19 = vector.broadcast %18 : vector<128x1xf32> to vector<128x128xf32>
    %20 = arith.subf %16, %19 : vector<128x128xf32>
    %21 = math.exp %20 : vector<128x128xf32>
    %cst_15 = arith.constant dense<0.000000e+00> : vector<128xf32>
    %22 = vector.multi_reduction <add>, %21, %cst_15 [1] : vector<128x128xf32> to vector<128xf32>
    %23 = vector.shape_cast %22 : vector<128xf32> to vector<128x1xf32>
    %24 = tpu.reciprocal %23 {approx = true} : vector<128x1xf32> -> vector<128x1xf32>
    %25 = arith.truncf %21 : vector<128x128xf32> to vector<128x128xbf16>
    %cst_16 = arith.constant dense<0.000000e+00> : vector<128x8xf32>
    %26 = tpu.matmul %25, %13, %cst_16 {dimension_numbers = #tpu.dot_dimension_numbers<[1], [0], [0], [1], [0, 0, 1, 1], [], []>} : vector<128x128xbf16>, vector<128x8xbf16>, vector<128x8xf32> -> vector<128x8xf32>
    %27 = vector.broadcast %24 : vector<128x1xf32> to vector<128x8xf32>
    %28 = arith.mulf %26, %27 : vector<128x8xf32>
    %29 = arith.truncf %28 : vector<128x8xf32> to vector<128x8xbf16>
    %30 = vector.extract_strided_slice %8 {offsets = [0, 8], sizes = [128, 8], strides = [1, 1]} : vector<128x32xbf16> to vector<128x8xbf16>
    %31 = vector.extract_strided_slice %9 {offsets = [0, 8], sizes = [128, 8], strides = [1, 1]} : vector<128x32xbf16> to vector<128x8xbf16>
    %32 = vector.extract_strided_slice %10 {offsets = [0, 8], sizes = [128, 8], strides = [1, 1]} : vector<128x32xbf16> to vector<128x8xbf16>
    %cst_17 = arith.constant dense<0.000000e+00> : vector<128x128xf32>
    %33 = tpu.matmul %30, %31, %cst_17 {dimension_numbers = #tpu.dot_dimension_numbers<[1], [1], [0], [0], [0, 0, 1, 0], [], []>} : vector<128x8xbf16>, vector<128x8xbf16>, vector<128x128xf32> -> vector<128x128xf32>
    %c0_18 = arith.constant 0 : index
    %c0_19 = arith.constant 0 : index
    %34 = vector.load %arg6[%c0_18, %c0_19] : memref<128x128xf32, #tpu.memory_space<vmem>>, vector<128x128xf32>
    %35 = arith.addf %33, %34 : vector<128x128xf32>
    %cst_20 = arith.constant dense<0xFF800000> : vector<128xf32>
    %36 = vector.multi_reduction <maximumf>, %35, %cst_20 [1] : vector<128x128xf32> to vector<128xf32>
    %37 = vector.shape_cast %36 : vector<128xf32> to vector<128x1xf32>
    %38 = vector.broadcast %37 : vector<128x1xf32> to vector<128x128xf32>
    %39 = arith.subf %35, %38 : vector<128x128xf32>
    %40 = math.exp %39 : vector<128x128xf32>
    %cst_21 = arith.constant dense<0.000000e+00> : vector<128xf32>
    %41 = vector.multi_reduction <add>, %40, %cst_21 [1] : vector<128x128xf32> to vector<128xf32>
    %42 = vector.shape_cast %41 : vector<128xf32> to vector<128x1xf32>
    %43 = tpu.reciprocal %42 {approx = true} : vector<128x1xf32> -> vector<128x1xf32>
    %44 = arith.truncf %40 : vector<128x128xf32> to vector<128x128xbf16>
    %cst_22 = arith.constant dense<0.000000e+00> : vector<128x8xf32>
    %45 = tpu.matmul %44, %32, %cst_22 {dimension_numbers = #tpu.dot_dimension_numbers<[1], [0], [0], [1], [0, 0, 1, 1], [], []>} : vector<128x128xbf16>, vector<128x8xbf16>, vector<128x8xf32> -> vector<128x8xf32>
    %46 = vector.broadcast %43 : vector<128x1xf32> to vector<128x8xf32>
    %47 = arith.mulf %45, %46 : vector<128x8xf32>
    %48 = arith.truncf %47 : vector<128x8xf32> to vector<128x8xbf16>
    %49 = vector.extract_strided_slice %8 {offsets = [0, 16], sizes = [128, 8], strides = [1, 1]} : vector<128x32xbf16> to vector<128x8xbf16>
    %50 = vector.extract_strided_slice %9 {offsets = [0, 16], sizes = [128, 8], strides = [1, 1]} : vector<128x32xbf16> to vector<128x8xbf16>
    %51 = vector.extract_strided_slice %10 {offsets = [0, 16], sizes = [128, 8], strides = [1, 1]} : vector<128x32xbf16> to vector<128x8xbf16>
    %cst_23 = arith.constant dense<0.000000e+00> : vector<128x128xf32>
    %52 = tpu.matmul %49, %50, %cst_23 {dimension_numbers = #tpu.dot_dimension_numbers<[1], [1], [0], [0], [0, 0, 1, 0], [], []>} : vector<128x8xbf16>, vector<128x8xbf16>, vector<128x128xf32> -> vector<128x128xf32>
    %c0_24 = arith.constant 0 : index
    %c0_25 = arith.constant 0 : index
    %53 = vector.load %arg6[%c0_24, %c0_25] : memref<128x128xf32, #tpu.memory_space<vmem>>, vector<128x128xf32>
    %54 = arith.addf %52, %53 : vector<128x128xf32>
    %cst_26 = arith.constant dense<0xFF800000> : vector<128xf32>
    %55 = vector.multi_reduction <maximumf>, %54, %cst_26 [1] : vector<128x128xf32> to vector<128xf32>
    %56 = vector.shape_cast %55 : vector<128xf32> to vector<128x1xf32>
    %57 = vector.broadcast %56 : vector<128x1xf32> to vector<128x128xf32>
    %58 = arith.subf %54, %57 : vector<128x128xf32>
    %59 = math.exp %58 : vector<128x128xf32>
    %cst_27 = arith.constant dense<0.000000e+00> : vector<128xf32>
    %60 = vector.multi_reduction <add>, %59, %cst_27 [1] : vector<128x128xf32> to vector<128xf32>
    %61 = vector.shape_cast %60 : vector<128xf32> to vector<128x1xf32>
    %62 = tpu.reciprocal %61 {approx = true} : vector<128x1xf32> -> vector<128x1xf32>
    %63 = arith.truncf %59 : vector<128x128xf32> to vector<128x128xbf16>
    %cst_28 = arith.constant dense<0.000000e+00> : vector<128x8xf32>
    %64 = tpu.matmul %63, %51, %cst_28 {dimension_numbers = #tpu.dot_dimension_numbers<[1], [0], [0], [1], [0, 0, 1, 1], [], []>} : vector<128x128xbf16>, vector<128x8xbf16>, vector<128x8xf32> -> vector<128x8xf32>
    %65 = vector.broadcast %62 : vector<128x1xf32> to vector<128x8xf32>
    %66 = arith.mulf %64, %65 : vector<128x8xf32>
    %67 = arith.truncf %66 : vector<128x8xf32> to vector<128x8xbf16>
    %68 = vector.extract_strided_slice %8 {offsets = [0, 24], sizes = [128, 8], strides = [1, 1]} : vector<128x32xbf16> to vector<128x8xbf16>
    %69 = vector.extract_strided_slice %9 {offsets = [0, 24], sizes = [128, 8], strides = [1, 1]} : vector<128x32xbf16> to vector<128x8xbf16>
    %70 = vector.extract_strided_slice %10 {offsets = [0, 24], sizes = [128, 8], strides = [1, 1]} : vector<128x32xbf16> to vector<128x8xbf16>
    %cst_29 = arith.constant dense<0.000000e+00> : vector<128x128xf32>
    %71 = tpu.matmul %68, %69, %cst_29 {dimension_numbers = #tpu.dot_dimension_numbers<[1], [1], [0], [0], [0, 0, 1, 0], [], []>} : vector<128x8xbf16>, vector<128x8xbf16>, vector<128x128xf32> -> vector<128x128xf32>
    %c0_30 = arith.constant 0 : index
    %c0_31 = arith.constant 0 : index
    %72 = vector.load %arg6[%c0_30, %c0_31] : memref<128x128xf32, #tpu.memory_space<vmem>>, vector<128x128xf32>
    %73 = arith.addf %71, %72 : vector<128x128xf32>
    %cst_32 = arith.constant dense<0xFF800000> : vector<128xf32>
    %74 = vector.multi_reduction <maximumf>, %73, %cst_32 [1] : vector<128x128xf32> to vector<128xf32>
    %75 = vector.shape_cast %74 : vector<128xf32> to vector<128x1xf32>
    %76 = vector.broadcast %75 : vector<128x1xf32> to vector<128x128xf32>
    %77 = arith.subf %73, %76 : vector<128x128xf32>
    %78 = math.exp %77 : vector<128x128xf32>
    %cst_33 = arith.constant dense<0.000000e+00> : vector<128xf32>
    %79 = vector.multi_reduction <add>, %78, %cst_33 [1] : vector<128x128xf32> to vector<128xf32>
    %80 = vector.shape_cast %79 : vector<128xf32> to vector<128x1xf32>
    %81 = tpu.reciprocal %80 {approx = true} : vector<128x1xf32> -> vector<128x1xf32>
    %82 = arith.truncf %78 : vector<128x128xf32> to vector<128x128xbf16>
    %cst_34 = arith.constant dense<0.000000e+00> : vector<128x8xf32>
    %83 = tpu.matmul %82, %70, %cst_34 {dimension_numbers = #tpu.dot_dimension_numbers<[1], [0], [0], [1], [0, 0, 1, 1], [], []>} : vector<128x128xbf16>, vector<128x8xbf16>, vector<128x8xf32> -> vector<128x8xf32>
    %84 = vector.broadcast %81 : vector<128x1xf32> to vector<128x8xf32>
    %85 = arith.mulf %83, %84 : vector<128x8xf32>
    %86 = arith.truncf %85 : vector<128x8xf32> to vector<128x8xbf16>
    %87 = tpu.concatenate %29, %48, %67, %86 in 1 : vector<128x8xbf16>, vector<128x8xbf16>, vector<128x8xbf16>, vector<128x8xbf16> -> vector<128x32xbf16>
    %c0_35 = arith.constant 0 : index
    %c0_36 = arith.constant 0 : index
    %88 = vector.load %arg9[%c0_35, %c0_36] : memref<128x32xbf16, #tpu.memory_space<vmem>>, vector<128x32xbf16>
    tpu.vector_store %arg9[%c0_35, %c0_36], %87 {strides = array<i32>} : memref<128x32xbf16, #tpu.memory_space<vmem>>, vector<128x32xbf16>,
    %c0_37 = arith.constant 0 : index
    %c0_38 = arith.constant 0 : index
    %89 = vector.load %arg9[%c0_37, %c0_38] : memref<128x32xbf16, #tpu.memory_space<vmem>>, vector<128x32xbf16>
    %c0_39 = arith.constant 0 : index
    %c0_40 = arith.constant 0 : index
    %90 = vector.load %arg4[%c0_39, %c0_40] : memref<32x32xbf16, #tpu.memory_space<vmem>>, vector<32x32xbf16>
    %cst_41 = arith.constant dense<0.000000e+00> : vector<128x32xf32>
    %91 = tpu.matmul %89, %90, %cst_41 {dimension_numbers = #tpu.dot_dimension_numbers<[1], [0], [0], [1], [0, 0, 1, 1], [], []>} : vector<128x32xbf16>, vector<32x32xbf16>, vector<128x32xf32> -> vector<128x32xf32>
    %c0_42 = arith.constant 0 : index
    %c0_43 = arith.constant 0 : index
    %92 = vector.load %arg5[%c0_42, %c0_43] : memref<1x32xf32, #tpu.memory_space<vmem>>, vector<1x32xf32>
    %93 = vector.broadcast %92 : vector<1x32xf32> to vector<128x32xf32>
    %94 = arith.addf %91, %93 : vector<128x32xf32>
    %c0_44 = arith.constant 0 : index
    %c0_45 = arith.constant 0 : index
    %95 = vector.load %arg7[%c0_44, %c0_45] : memref<128x32xf32, #tpu.memory_space<vmem>>, vector<128x32xf32>
    tpu.vector_store %arg7[%c0_44, %c0_45], %94 {strides = array<i32>} : memref<128x32xf32, #tpu.memory_space<vmem>>, vector<128x32xf32>,
    return
  }
  func.func @transform_0(%arg0: i32) -> (i32, i32) {
    %c0_i32 = arith.constant 0 : i32
    %c0_i32_0 = arith.constant 0 : i32
    return %arg0, %c0_i32 : i32, i32
  }
  func.func @transform_1(%arg0: i32) -> (i32, i32) {
    %c0_i32 = arith.constant 0 : i32
    %c0_i32_0 = arith.constant 0 : i32
    %c0_i32_1 = arith.constant 0 : i32
    return %c0_i32, %c0_i32_0 : i32, i32
  }
  func.func @transform_2(%arg0: i32) -> (i32, i32) {
    %c0_i32 = arith.constant 0 : i32
    %c0_i32_0 = arith.constant 0 : i32
    %c0_i32_1 = arith.constant 0 : i32
    return %c0_i32, %c0_i32_0 : i32, i32
  }
  func.func @transform_3(%arg0: i32) -> (i32, i32) {
    %c0_i32 = arith.constant 0 : i32
    %c0_i32_0 = arith.constant 0 : i32
    %c0_i32_1 = arith.constant 0 : i32
    return %c0_i32, %c0_i32_0 : i32, i32
  }
  func.func @transform_4(%arg0: i32) -> (i32, i32) {
    %c0_i32 = arith.constant 0 : i32
    %c0_i32_0 = arith.constant 0 : i32
    %c0_i32_1 = arith.constant 0 : i32
    return %c0_i32, %c0_i32_0 : i32, i32
  }
  func.func @transform_5(%arg0: i32) -> (i32, i32) {
    %c0_i32 = arith.constant 0 : i32
    %c0_i32_0 = arith.constant 0 : i32
    %c0_i32_1 = arith.constant 0 : i32
    return %c0_i32, %c0_i32_0 : i32, i32
  }
  func.func @transform_6(%arg0: i32) -> (i32, i32) {
    %c0_i32 = arith.constant 0 : i32
    %c0_i32_0 = arith.constant 0 : i32
    return %arg0, %c0_i32 : i32, i32
  }
}

</mosaic_0001>

<llo_original>
// kernel: tpu_custom_call.1
$region0: #{tpu_custom_call.1}
  #allocation0 [shape = 'u32[]', space=smem, size = 0x4, offset = 0x4, fixed_abs, tag = 'smem constant byte address 0x4 - core index']
  #allocation1 [shape = 'u32[72,128]{1,0:T(1,128)}', space=vmem, size = 0x9000, scoped, tag = 'internal scratch']
  #allocation2 [shape = 'bf16[128,96]{1,0:T(8,128)(2,1)}', space=vmem, size = 0x8000, scoped, tag = 'scratch operand']
  #allocation3 [shape = 'bf16[128,32]{1,0:T(8,128)(2,1)}', space=vmem, size = 0x8000, scoped, tag = 'scratch operand']
  %s0 = inlined_call_operand.vmem [shape: bf16[256,32], index: 0, kind: input, shape index: {}]
  %s1 = inlined_call_operand.vmem [shape: bf16[32,96], index: 1, kind: input, shape index: {}]
  %s2 = inlined_call_operand.vmem [shape: f32[1,96], index: 2, kind: input, shape index: {}]
  %s3 = inlined_call_operand.vmem [shape: bf16[32,32], index: 3, kind: input, shape index: {}]
  %s4 = inlined_call_operand.vmem [shape: f32[1,32], index: 4, kind: input, shape index: {}]
  %s5 = inlined_call_operand.vmem [shape: f32[128,128], index: 5, kind: input, shape index: {}]
  %s6 = inlined_call_operand.vmem [shape: f32[256,32], index: 6, kind: output, shape index: {}]
  %s7 = sld [smem:[#allocation0]]
  $region57: #{tpu_custom_call.1} parent=0
    _
  %s9 = ssub.s32 1, %s7
  %s10 = scalar_select 0, %s9, %s7
  loop: start=0, step=1, limit=4
  $region2: #{tpu_custom_call.1} parent=0 // loop_pre_header
    _
  $region3: #{tpu_custom_call.1} parent=0 // loop_header
    %s12 = sphi 0, %s16
    %p13 = scmp.ge.s32.totalorder %s12, 4
    %s22 = sphi 0, %s24
    %s25 = sphi 0, %s22
    %s26 = sphi 0, %s25
    %s42 = sphi 0, %s26
    %s46 = sphi 0, %s46
    %s48 = sphi 0, %s46
    %s49 = sphi 0, %s48
    %s63 = sphi 0, %s49
    %s67 = sphi 0, %s67
    %s69 = sphi 0, %s67
    %s70 = sphi 0, %s69
    %s84 = sphi 0, %s70
    %s88 = sphi 0, %s88
    %s90 = sphi 0, %s88
    %s91 = sphi 0, %s90
    %s105 = sphi 0, %s91
    %s109 = sphi 0, %s109
    %s111 = sphi 0, %s109
    %s112 = sphi 0, %s111
    %s126 = sphi 0, %s112
    %s130 = sphi 0, %s130
    %s132 = sphi 0, %s130
    %s133 = sphi 0, %s132
    %s147 = sphi 0, %s133
    %s153 = sphi 0, %s155
    %s156 = sphi 0, %s153
    %s157 = sphi 0, %s156
    %s173 = sphi 0, %s157
  $region4: #{tpu_custom_call.1} parent=0 // loop_header_branch
    %15 = sbr.rel (%p13) target = $region8
  $region5: #{tpu_custom_call.1} parent=0 // loop_body
    %s17 = ssub.s32 %s12, 1
    %s18 = ssub.s32 %s12, 2
    %s19 = sadd.s32 %s12, 1
    %s20 = ssub.s32 %s12, %s19
    %p21 = scmp.eq.s32.totalorder %s20, 0
    %s23 = sadd.s32 %s22, 1
    %s24 = scalar_select %p21, %s22, %s23
    %p27 = pneg %p21
    %p28 = scmp.eq.s32.totalorder %s12, 1
    %p29 = por %p27, %p28
    %p30 = scmp.ne.s32.totalorder %s22, %s25
    %p31 = scmp.eq.s32.totalorder %s12, 0
    %p32 = por %p30, %p31
    %p33 = scmp.ne.s32.totalorder %s22, %s25
    %p34 = scmp.eq.s32.totalorder %s17, 1
    %p35 = por %p33, %p34
    %p36 = scmp.ne.s32.totalorder %s25, %s26
    %p37 = scmp.eq.s32.totalorder %s17, 0
    %p38 = por %p36, %p37
    %p39 = scmp.ne.s32.totalorder %s25, %s26
    %p40 = scmp.eq.s32.totalorder %s18, 1
    %p41 = por %p39, %p40
    %p43 = scmp.ne.s32.totalorder %s26, %s42
    %p44 = scmp.eq.s32.totalorder %s18, 0
    %p45 = por %p43, %p44
    %s47 = sadd.s32 %s46, 1
    %p50 = scmp.eq.s32.totalorder %s12, 1
    %p51 = scmp.ne.s32.totalorder %s46, %s48
    %p52 = scmp.eq.s32.totalorder %s12, 0
    %p53 = por %p51, %p52
    %p54 = scmp.ne.s32.totalorder %s46, %s48
    %p55 = scmp.eq.s32.totalorder %s17, 1
    %p56 = por %p54, %p55
    %p57 = scmp.ne.s32.totalorder %s48, %s49
    %p58 = scmp.eq.s32.totalorder %s17, 0
    %p59 = por %p57, %p58
    %p60 = scmp.ne.s32.totalorder %s48, %s49
    %p61 = scmp.eq.s32.totalorder %s18, 1
    %p62 = por %p60, %p61
    %p64 = scmp.ne.s32.totalorder %s49, %s63
    %p65 = scmp.eq.s32.totalorder %s18, 0
    %p66 = por %p64, %p65
    %s68 = sadd.s32 %s67, 1
    %p71 = scmp.eq.s32.totalorder %s12, 1
    %p72 = scmp.ne.s32.totalorder %s67, %s69
    %p73 = scmp.eq.s32.totalorder %s12, 0
    %p74 = por %p72, %p73
    %p75 = scmp.ne.s32.totalorder %s67, %s69
    %p76 = scmp.eq.s32.totalorder %s17, 1
    %p77 = por %p75, %p76
    %p78 = scmp.ne.s32.totalorder %s69, %s70
    %p79 = scmp.eq.s32.totalorder %s17, 0
    %p80 = por %p78, %p79
    %p81 = scmp.ne.s32.totalorder %s69, %s70
    %p82 = scmp.eq.s32.totalorder %s18, 1
    %p83 = por %p81, %p82
    %p85 = scmp.ne.s32.totalorder %s70, %s84
    %p86 = scmp.eq.s32.totalorder %s18, 0
    %p87 = por %p85, %p86
    %s89 = sadd.s32 %s88, 1
    %p92 = scmp.eq.s32.totalorder %s12, 1
    %p93 = scmp.ne.s32.totalorder %s88, %s90
    %p94 = scmp.eq.s32.totalorder %s12, 0
    %p95 = por %p93, %p94
    %p96 = scmp.ne.s32.totalorder %s88, %s90
    %p97 = scmp.eq.s32.totalorder %s17, 1
    %p98 = por %p96, %p97
    %p99 = scmp.ne.s32.totalorder %s90, %s91
    %p100 = scmp.eq.s32.totalorder %s17, 0
    %p101 = por %p99, %p100
    %p102 = scmp.ne.s32.totalorder %s90, %s91
    %p103 = scmp.eq.s32.totalorder %s18, 1
    %p104 = por %p102, %p103
    %p106 = scmp.ne.s32.totalorder %s91, %s105
    %p107 = scmp.eq.s32.totalorder %s18, 0
    %p108 = por %p106, %p107
    %s110 = sadd.s32 %s109, 1
    %p113 = scmp.eq.s32.totalorder %s12, 1
    %p114 = scmp.ne.s32.totalorder %s109, %s111
    %p115 = scmp.eq.s32.totalorder %s12, 0
    %p116 = por %p114, %p115
    %p117 = scmp.ne.s32.totalorder %s109, %s111
    %p118 = scmp.eq.s32.totalorder %s17, 1
    %p119 = por %p117, %p118
    %p120 = scmp.ne.s32.totalorder %s111, %s112
    %p121 = scmp.eq.s32.totalorder %s17, 0
    %p122 = por %p120, %p121
    %p123 = scmp.ne.s32.totalorder %s111, %s112
    %p124 = scmp.eq.s32.totalorder %s18, 1
    %p125 = por %p123, %p124
    %p127 = scmp.ne.s32.totalorder %s112, %s126
    %p128 = scmp.eq.s32.totalorder %s18, 0
    %p129 = por %p127, %p128
    %s131 = sadd.s32 %s130, 1
    %p134 = scmp.eq.s32.totalorder %s12, 1
    %p135 = scmp.ne.s32.totalorder %s130, %s132
    %p136 = scmp.eq.s32.totalorder %s12, 0
    %p137 = por %p135, %p136
    %p138 = scmp.ne.s32.totalorder %s130, %s132
    %p139 = scmp.eq.s32.totalorder %s17, 1
    %p140 = por %p138, %p139
    %p141 = scmp.ne.s32.totalorder %s132, %s133
    %p142 = scmp.eq.s32.totalorder %s17, 0
    %p143 = por %p141, %p142
    %p144 = scmp.ne.s32.totalorder %s132, %s133
    %p145 = scmp.eq.s32.totalorder %s18, 1
    %p146 = por %p144, %p145
    %p148 = scmp.ne.s32.totalorder %s133, %s147
    %p149 = scmp.eq.s32.totalorder %s18, 0
    %p150 = por %p148, %p149
    %s151 = ssub.s32 %s12, %s19
    %p152 = scmp.eq.s32.totalorder %s151, 0
    %s154 = sadd.s32 %s153, 1
    %s155 = scalar_select %p152, %s153, %s154
    %p158 = pneg %p152
    %p159 = scmp.eq.s32.totalorder %s12, 1
    %p160 = por %p158, %p159
    %p161 = scmp.ne.s32.totalorder %s153, %s156
    %p162 = scmp.eq.s32.totalorder %s12, 0
    %p163 = por %p161, %p162
    %p164 = scmp.ne.s32.totalorder %s153, %s156
    %p165 = scmp.eq.s32.totalorder %s17, 1
    %p166 = por %p164, %p165
    %p167 = scmp.ne.s32.totalorder %s156, %s157
    %p168 = scmp.eq.s32.totalorder %s17, 0
    %p169 = por %p167, %p168
    %p170 = scmp.ne.s32.totalorder %s156, %s157
    %p171 = scmp.eq.s32.totalorder %s18, 1
    %p172 = por %p170, %p171
    %p174 = scmp.ne.s32.totalorder %s157, %s173
    %p175 = scmp.eq.s32.totalorder %s18, 0
    %p176 = por %p174, %p175
    %p177 = scmp.le.s32.totalorder 1, %s12
    %p178 = scmp.lt.s32.totalorder %s12, 3
    %p179 = pnand %p177, %p178
    %p180 = pneg %p179
    // Predicated region
    $region9: #{tpu_custom_call.1} parent=5 // pred_check
      _
    $region10: #{tpu_custom_call.1} parent=5 // pred_check_branch
      %182 = sbr.rel (%p179) target = $region12
    $region11: #{tpu_custom_call.1} parent=5 // pred_region
      %s183 = ssub.s32 %s12, 1
      // Predicated region
      $region13: #{tpu_custom_call.1} parent=11 // pred_check
        %p184 = pneg %p59
      $region14: #{tpu_custom_call.1} parent=11 // pred_check_branch
        %186 = sbr.rel (%p184) target = $region16
      $region15: #{tpu_custom_call.1} parent=11 // pred_region
        _
      $region16: #{tpu_custom_call.1} parent=11 // pred_fallthru
        _
      // Predicated region
      $region17: #{tpu_custom_call.1} parent=11 // pred_check
        %p187 = pneg %p80
      $region18: #{tpu_custom_call.1} parent=11 // pred_check_branch
        %189 = sbr.rel (%p187) target = $region20
      $region19: #{tpu_custom_call.1} parent=11 // pred_region
        _
      $region20: #{tpu_custom_call.1} parent=11 // pred_fallthru
        _
      // Predicated region
      $region21: #{tpu_custom_call.1} parent=11 // pred_check
        %p190 = pneg %p101
      $region22: #{tpu_custom_call.1} parent=11 // pred_check_branch
        %192 = sbr.rel (%p190) target = $region24
      $region23: #{tpu_custom_call.1} parent=11 // pred_region
        _
      $region24: #{tpu_custom_call.1} parent=11 // pred_fallthru
        _
      // Predicated region
      $region25: #{tpu_custom_call.1} parent=11 // pred_check
        %p193 = pneg %p122
      $region26: #{tpu_custom_call.1} parent=11 // pred_check_branch
        %195 = sbr.rel (%p193) target = $region28
      $region27: #{tpu_custom_call.1} parent=11 // pred_region
        _
      $region28: #{tpu_custom_call.1} parent=11 // pred_fallthru
        _
      // Predicated region
      $region29: #{tpu_custom_call.1} parent=11 // pred_check
        %p196 = pneg %p143
      $region30: #{tpu_custom_call.1} parent=11 // pred_check_branch
        %198 = sbr.rel (%p196) target = $region32
      $region31: #{tpu_custom_call.1} parent=11 // pred_region
        _
      $region32: #{tpu_custom_call.1} parent=11 // pred_fallthru
        _
    $region12: #{tpu_custom_call.1} parent=5 // pred_fallthru
      _
    %p199 = scmp.lt.s32.totalorder %s12, 2
    // Predicated region
    $region33: #{tpu_custom_call.1} parent=5 // pred_check
      %p200 = pneg %p199
    $region34: #{tpu_custom_call.1} parent=5 // pred_check_branch
      %202 = sbr.rel (%p200) target = $region36
    $region35: #{tpu_custom_call.1} parent=5 // pred_region
      // Predicated region
      $region37: #{tpu_custom_call.1} parent=35 // pred_check
        %p203 = pneg %p32
      $region38: #{tpu_custom_call.1} parent=35 // pred_check_branch
        %205 = sbr.rel (%p203) target = $region40
      $region39: #{tpu_custom_call.1} parent=35 // pred_region
        %s206 = smul.u32 16, %s12
        %p207 = scmp.lt.s32.totalorder %s206, 31
        %s208 = scalar_select %p207, %s206, 31
        %s209 = smul.addr %s208, 4
        %s210 = scalar_lea.vmem %s0, %s209
        %s211 = smul.u32 16, %s12
      $region40: #{tpu_custom_call.1} parent=35 // pred_fallthru
        _
    $region36: #{tpu_custom_call.1} parent=5 // pred_fallthru
      _
    %p212 = scmp.le.s32.totalorder 1, %s12
    %p213 = scmp.lt.s32.totalorder %s12, 3
    %p214 = pnand %p212, %p213
    %p215 = pneg %p214
    // Predicated region
    $region41: #{tpu_custom_call.1} parent=5 // pred_check
      _
    $region42: #{tpu_custom_call.1} parent=5 // pred_check_branch
      %217 = sbr.rel (%p214) target = $region44
    $region43: #{tpu_custom_call.1} parent=5 // pred_region
      %s218 = ssub.s32 %s12, 1
      %s219 = smul.u32 16, %s17
      %p220 = scmp.lt.s32.totalorder %s219, 31
      %s221 = scalar_select %p220, %s219, 31
      %s222 = smul.addr %s221, 4
      %s223 = scalar_lea.vmem %s0, %s222
      %p224 = pneg %p38
      %p225 = pneg %p35
      %p226 = pneg %p59
      %p227 = pneg %p56
      %p228 = pneg %p80
      %p229 = pneg %p77
      %p230 = pneg %p101
      %p231 = pneg %p98
      %p232 = pneg %p122
      %p233 = pneg %p119
      %p234 = pneg %p143
      %p235 = pneg %p140
      %p236 = pneg %p169
      %p237 = pneg %p166
      %s238 = smul.u32 16, %s17
      %p239 = scmp.lt.s32.totalorder %s238, 31
      %s240 = scalar_select %p239, %s238, 31
      %s241 = smul.addr %s240, 8
      %s242 = scalar_lea.vmem %s6, %s241
      %s243 = smul.u32 16, %s17
      %p244 = scmp.lt.s32.totalorder %s243, 31
      %s245 = scalar_select %p244, %s243, 31
      %s246 = smul.addr %s245, 4
      %s247 = scalar_lea.vmem %s0, %s246
      %s248 = smul.u32 16, %s17
      %s249 = smul.u32 16, %s17
      %p250 = scmp.lt.s32.totalorder %s249, 31
      %s251 = scalar_select %p250, %s249, 31
      %s252 = smul.addr %s251, 8
      %s253 = scalar_lea.vmem %s6, %s252
      %s254 = smul.u32 16, %s17
      %v256 = vld [vmem:[%s247] sm:$0xf]
      %v257 = vld [vmem:[%s247 + $0x4] sm:$0xf]
      %v258 = vld [vmem:[%s247 + $0x8] sm:$0xf]
      %v259 = vld [vmem:[%s247 + $0xc] sm:$0xf]
      %v260 = vld [vmem:[%s247 + $0x10] sm:$0xf]
      %v261 = vld [vmem:[%s247 + $0x14] sm:$0xf]
      %v262 = vld [vmem:[%s247 + $0x18] sm:$0xf]
      %v263 = vld [vmem:[%s247 + $0x1c] sm:$0xf]
      %v264 = vld [vmem:[%s247 + $0x20] sm:$0xf]
      %v265 = vld [vmem:[%s247 + $0x24] sm:$0xf]
      %v266 = vld [vmem:[%s247 + $0x28] sm:$0xf]
      %v267 = vld [vmem:[%s247 + $0x2c] sm:$0xf]
      %v268 = vld [vmem:[%s247 + $0x30] sm:$0xf]
      %v269 = vld [vmem:[%s247 + $0x34] sm:$0xf]
      %v270 = vld [vmem:[%s247 + $0x38] sm:$0xf]
      %v271 = vld [vmem:[%s247 + $0x3c] sm:$0xf]
      %v272 = vld [vmem:[%s1] sm:$0xf]
      %v273 = vld [vmem:[%s1 + $0x4] sm:$0xf]
      %v274 = vld [vmem:[%s1 + $0x8] sm:$0xf]
      %v275 = vld [vmem:[%s1 + $0xc] sm:$0xf]
      %v276 = vld [vmem:[%s2] sm:$0x1]
      %v278 = vperm.slane %v276, 0
      %v296 = vunpack.c.l.b16 %v256
      %v297 = vunpack.c.l.b16 %v257
      %v298 = vunpack.c.l.b16 %v258
      %v299 = vunpack.c.l.b16 %v259
      %v300 = vunpack.c.l.b16 %v260
      %v301 = vunpack.c.l.b16 %v261
      %v302 = vunpack.c.l.b16 %v262
      %v303 = vunpack.c.l.b16 %v263
      %v304 = vunpack.c.l.b16 %v264
      %v305 = vunpack.c.l.b16 %v265
      %v306 = vunpack.c.l.b16 %v266
      %v307 = vunpack.c.l.b16 %v267
      %v308 = vunpack.c.l.b16 %v268
      %v309 = vunpack.c.l.b16 %v269
      %v310 = vunpack.c.l.b16 %v270
      %v311 = vunpack.c.l.b16 %v271
      %v312 = vpack.c.b16 %v297, %v296
      %v313 = vpack.c.b16 %v299, %v298
      %v314 = vpack.c.b16 %v301, %v300
      %v315 = vpack.c.b16 %v303, %v302
      %v316 = vpack.c.b16 %v305, %v304
      %v317 = vpack.c.b16 %v307, %v306
      %v318 = vpack.c.b16 %v309, %v308
      %v319 = vpack.c.b16 %v311, %v310
      %v324 = vunpack.c.l.b16 %v272
      %v325 = vunpack.c.l.b16 %v273
      %v326 = vunpack.c.l.b16 %v274
      %v327 = vunpack.c.l.b16 %v275
      %v328 = vpack.c.b16 %v325, %v324
      %v329 = vpack.c.b16 %v327, %v326
      %vm332 = vcmask 261120
      %v334 = vsel %vm332, %v312, 0
      %v337 = vsel %vm332, %v313, 0
      %v340 = vsel %vm332, %v314, 0
      %v343 = vsel %vm332, %v315, 0
      %v346 = vsel %vm332, %v316, 0
      %v349 = vsel %vm332, %v317, 0
      %v352 = vsel %vm332, %v318, 0
      %v355 = vsel %vm332, %v319, 0
      %357 = vmatpush.bf16.msra.mxu0 0
      %358 = vmatpush.bf16.msra.mxu0 0
      %359 = vmatpush.bf16.msra.mxu0 0
      %360 = vmatpush.bf16.msra.mxu0 0
      %361 = vmatpush.bf16.msra.mxu0 0
      %362 = vmatpush.bf16.msra.mxu0 0
      %363 = vmatpush.bf16.msra.mxu0 %v329
      %364 = vmatpush.bf16.msra.mxu0 %v328
      %365 = vmatmul.bf16.gmra.mxu0 %v334
      %v366 = vpop.f32.mrf.mxu0
      %v367 = vadd.f32 %v278, %v366
      %v368 = vpop.f32.mrf.mxu0
      %v369 = vadd.f32 %v278, %v368
      %370 = vmatmul.bf16.gmra.mxu0 %v337
      %v371 = vpop.f32.mrf.mxu0
      %v372 = vadd.f32 %v278, %v371
      %v373 = vpop.f32.mrf.mxu0
      %v374 = vadd.f32 %v278, %v373
      %375 = vmatmul.bf16.gmra.mxu0 %v340
      %v376 = vpop.f32.mrf.mxu0
      %v377 = vadd.f32 %v278, %v376
      %v378 = vpop.f32.mrf.mxu0
      %v379 = vadd.f32 %v278, %v378
      %380 = vmatmul.bf16.gmra.mxu0 %v343
      %v381 = vpop.f32.mrf.mxu0
      %v382 = vadd.f32 %v278, %v381
      %v383 = vpop.f32.mrf.mxu0
      %v384 = vadd.f32 %v278, %v383
      %385 = vmatmul.bf16.gmra.mxu0 %v346
      %v386 = vpop.f32.mrf.mxu0
      %v387 = vadd.f32 %v278, %v386
      %v388 = vpop.f32.mrf.mxu0
      %v389 = vadd.f32 %v278, %v388
      %390 = vmatmul.bf16.gmra.mxu0 %v349
      %v391 = vpop.f32.mrf.mxu0
      %v392 = vadd.f32 %v278, %v391
      %v393 = vpop.f32.mrf.mxu0
      %v394 = vadd.f32 %v278, %v393
      %395 = vmatmul.bf16.gmra.mxu0 %v352
      %v396 = vpop.f32.mrf.mxu0
      %v397 = vadd.f32 %v278, %v396
      %v398 = vpop.f32.mrf.mxu0
      %v399 = vadd.f32 %v278, %v398
      %400 = vmatmul.bf16.gmra.mxu0 %v355
      %v401 = vpop.f32.mrf.mxu0
      %v402 = vadd.f32 %v278, %v401
      %v403 = vpop.f32.mrf.mxu0
      %v404 = vadd.f32 %v278, %v403
      %405 = vdwg.mxu0
      %v406 = vpack.c.bf16 %v367, %v367
      %v407 = vpack.c.bf16 %v369, %v369
      %v408 = vpack.c.bf16 %v372, %v372
      %v409 = vpack.c.bf16 %v374, %v374
      %v410 = vpack.c.bf16 %v377, %v377
      %v411 = vpack.c.bf16 %v379, %v379
      %v412 = vpack.c.bf16 %v382, %v382
      %v413 = vpack.c.bf16 %v384, %v384
      %v414 = vpack.c.bf16 %v387, %v387
      %v415 = vpack.c.bf16 %v389, %v389
      %v416 = vpack.c.bf16 %v392, %v392
      %v417 = vpack.c.bf16 %v394, %v394
      %v418 = vpack.c.bf16 %v397, %v397
      %v419 = vpack.c.bf16 %v399, %v399
      %v420 = vpack.c.bf16 %v402, %v402
      %v421 = vpack.c.bf16 %v404, %v404
      %vm422 = vcmask 781312
      %423 = vst.msk [vmem:[#allocation2] sm:$0xf] %vm422, %v406
      %424 = vst.msk [vmem:[#allocation2 + $0x4] sm:$0xf] %vm422, %v407
      %425 = vst.msk [vmem:[#allocation2 + $0x8] sm:$0xf] %vm422, %v408
      %426 = vst.msk [vmem:[#allocation2 + $0xc] sm:$0xf] %vm422, %v409
      %427 = vst.msk [vmem:[#allocation2 + $0x10] sm:$0xf] %vm422, %v410
      %428 = vst.msk [vmem:[#allocation2 + $0x14] sm:$0xf] %vm422, %v411
      %429 = vst.msk [vmem:[#allocation2 + $0x18] sm:$0xf] %vm422, %v412
      %430 = vst.msk [vmem:[#allocation2 + $0x1c] sm:$0xf] %vm422, %v413
      %431 = vst.msk [vmem:[#allocation2 + $0x20] sm:$0xf] %vm422, %v414
      %432 = vst.msk [vmem:[#allocation2 + $0x24] sm:$0xf] %vm422, %v415
      %433 = vst.msk [vmem:[#allocation2 + $0x28] sm:$0xf] %vm422, %v416
      %434 = vst.msk [vmem:[#allocation2 + $0x2c] sm:$0xf] %vm422, %v417
      %435 = vst.msk [vmem:[#allocation2 + $0x30] sm:$0xf] %vm422, %v418
      %436 = vst.msk [vmem:[#allocation2 + $0x34] sm:$0xf] %vm422, %v419
      %437 = vst.msk [vmem:[#allocation2 + $0x38] sm:$0xf] %vm422, %v420
      %438 = vst.msk [vmem:[#allocation2 + $0x3c] sm:$0xf] %vm422, %v421
      %v439 = vld [vmem:[#allocation2] sm:$0xf]
      %v440 = vld [vmem:[#allocation2 + $0x4] sm:$0xf]
      %v441 = vld [vmem:[#allocation2 + $0x8] sm:$0xf]
      %v442 = vld [vmem:[#allocation2 + $0xc] sm:$0xf]
      %v443 = vld [vmem:[#allocation2 + $0x10] sm:$0xf]
      %v444 = vld [vmem:[#allocation2 + $0x14] sm:$0xf]
      %v445 = vld [vmem:[#allocation2 + $0x18] sm:$0xf]
      %v446 = vld [vmem:[#allocation2 + $0x1c] sm:$0xf]
      %v447 = vld [vmem:[#allocation2 + $0x20] sm:$0xf]
      %v448 = vld [vmem:[#allocation2 + $0x24] sm:$0xf]
      %v449 = vld [vmem:[#allocation2 + $0x28] sm:$0xf]
      %v450 = vld [vmem:[#allocation2 + $0x2c] sm:$0xf]
      %v451 = vld [vmem:[#allocation2 + $0x30] sm:$0xf]
      %v452 = vld [vmem:[#allocation2 + $0x34] sm:$0xf]
      %v453 = vld [vmem:[#allocation2 + $0x38] sm:$0xf]
      %v454 = vld [vmem:[#allocation2 + $0x3c] sm:$0xf]
      %v455 = vld [vmem:[%s5] sm:$0xff]
      %v456 = vld [vmem:[%s5 + $0x8] sm:$0xff]
      %v457 = vld [vmem:[%s5 + $0x10] sm:$0xff]
      %v458 = vld [vmem:[%s5 + $0x18] sm:$0xff]
      %v459 = vld [vmem:[%s5 + $0x20] sm:$0xff]
      %v460 = vld [vmem:[%s5 + $0x28] sm:$0xff]
      %v461 = vld [vmem:[%s5 + $0x30] sm:$0xff]
      %v462 = vld [vmem:[%s5 + $0x38] sm:$0xff]
      %v463 = vld [vmem:[%s5 + $0x40] sm:$0xff]
      %v464 = vld [vmem:[%s5 + $0x48] sm:$0xff]
      %v465 = vld [vmem:[%s5 + $0x50] sm:$0xff]
      %v466 = vld [vmem:[%s5 + $0x58] sm:$0xff]
      %v467 = vld [vmem:[%s5 + $0x60] sm:$0xff]
      %v468 = vld [vmem:[%s5 + $0x68] sm:$0xff]
      %v469 = vld [vmem:[%s5 + $0x70] sm:$0xff]
      %v470 = vld [vmem:[%s5 + $0x78] sm:$0xff]
      %v487 = vunpack.c.l.b16 %v439
      %v488 = vunpack.c.l.b16 %v440
      %v489 = vunpack.c.l.b16 %v441
      %v490 = vunpack.c.l.b16 %v442
      %v491 = vunpack.c.l.b16 %v443
      %v492 = vunpack.c.l.b16 %v444
      %v493 = vunpack.c.l.b16 %v445
      %v494 = vunpack.c.l.b16 %v446
      %v495 = vunpack.c.l.b16 %v447
      %v496 = vunpack.c.l.b16 %v448
      %v497 = vunpack.c.l.b16 %v449
      %v498 = vunpack.c.l.b16 %v450
      %v499 = vunpack.c.l.b16 %v451
      %v500 = vunpack.c.l.b16 %v452
      %v501 = vunpack.c.l.b16 %v453
      %v502 = vunpack.c.l.b16 %v454
      %v503 = vpack.c.b16 %v488, %v487
      %v504 = vpack.c.b16 %v490, %v489
      %v505 = vpack.c.b16 %v492, %v491
      %v506 = vpack.c.b16 %v494, %v493
      %v507 = vpack.c.b16 %v496, %v495
      %v508 = vpack.c.b16 %v498, %v497
      %v509 = vpack.c.b16 %v500, %v499
      %v510 = vpack.c.b16 %v502, %v501
      %511 = vrot.lane.b32.xlu0 %v503, 96
      %v512 = vpop.permute.xlu0 %511
      %513 = vrot.lane.b32.xlu0 %v504, 96
      %v514 = vpop.permute.xlu0 %513
      %515 = vrot.lane.b32.xlu0 %v505, 96
      %v516 = vpop.permute.xlu0 %515
      %517 = vrot.lane.b32.xlu0 %v506, 96
      %v518 = vpop.permute.xlu0 %517
      %519 = vrot.lane.b32.xlu0 %v507, 96
      %v520 = vpop.permute.xlu0 %519
      %521 = vrot.lane.b32.xlu0 %v508, 96
      %v522 = vpop.permute.xlu0 %521
      %523 = vrot.lane.b32.xlu0 %v509, 96
      %v524 = vpop.permute.xlu0 %523
      %525 = vrot.lane.b32.xlu0 %v510, 96
      %v526 = vpop.permute.xlu0 %525
      %vm527 = vcmask 64512
      %v529 = vsel %vm527, %v503, 0
      %v532 = vsel %vm527, %v504, 0
      %v535 = vsel %vm527, %v505, 0
      %v538 = vsel %vm527, %v506, 0
      %v541 = vsel %vm527, %v507, 0
      %v544 = vsel %vm527, %v508, 0
      %v547 = vsel %vm527, %v509, 0
      %v550 = vsel %vm527, %v510, 0
      %v553 = vsel %vm527, %v512, 0
      %v556 = vsel %vm527, %v514, 0
      %v559 = vsel %vm527, %v516, 0
      %v562 = vsel %vm527, %v518, 0
      %v565 = vsel %vm527, %v520, 0
      %v568 = vsel %vm527, %v522, 0
      %v571 = vsel %vm527, %v524, 0
      %v574 = vsel %vm527, %v526, 0
      %576 = vmatpush.bf16.xpose.msra.mxu0 %v574
      %577 = vmatpush.bf16.xpose.msra.mxu0 %v571
      %578 = vmatpush.bf16.xpose.msra.mxu0 %v568
      %579 = vmatpush.bf16.xpose.msra.mxu0 %v565
      %580 = vmatpush.bf16.xpose.msra.mxu0 %v562
      %581 = vmatpush.bf16.xpose.msra.mxu0 %v559
      %582 = vmatpush.bf16.xpose.msra.mxu0 %v556
      %583 = vmatpush.bf16.xpose.msra.mxu0 %v553
      %584 = vmatmul.bf16.gmra.mxu0 %v529
      %v585 = vpop.f32.mrf.mxu0
      %v586 = vadd.f32 %v455, %v585
      %v587 = vpop.f32.mrf.mxu0
      %v588 = vadd.f32 %v456, %v587
      %589 = vmatmul.bf16.gmra.mxu0 %v532
      %v590 = vpop.f32.mrf.mxu0
      %v591 = vadd.f32 %v457, %v590
      %v592 = vpop.f32.mrf.mxu0
      %v593 = vadd.f32 %v458, %v592
      %594 = vmatmul.bf16.gmra.mxu0 %v535
      %v595 = vpop.f32.mrf.mxu0
      %v596 = vadd.f32 %v459, %v595
      %v597 = vpop.f32.mrf.mxu0
      %v598 = vadd.f32 %v460, %v597
      %599 = vmatmul.bf16.gmra.mxu0 %v538
      %v600 = vpop.f32.mrf.mxu0
      %v601 = vadd.f32 %v461, %v600
      %v602 = vpop.f32.mrf.mxu0
      %v603 = vadd.f32 %v462, %v602
      %604 = vmatmul.bf16.gmra.mxu0 %v541
      %v605 = vpop.f32.mrf.mxu0
      %v606 = vadd.f32 %v463, %v605
      %v607 = vpop.f32.mrf.mxu0
      %v608 = vadd.f32 %v464, %v607
      %609 = vmatmul.bf16.gmra.mxu0 %v544
      %v610 = vpop.f32.mrf.mxu0
      %v611 = vadd.f32 %v465, %v610
      %v612 = vpop.f32.mrf.mxu0
      %v613 = vadd.f32 %v466, %v612
      %614 = vmatmul.bf16.gmra.mxu0 %v547
      %v615 = vpop.f32.mrf.mxu0
      %v616 = vadd.f32 %v467, %v615
      %v617 = vpop.f32.mrf.mxu0
      %v618 = vadd.f32 %v468, %v617
      %619 = vmatmul.bf16.gmra.mxu0 %v550
      %v620 = vpop.f32.mrf.mxu0
      %v621 = vadd.f32 %v469, %v620
      %v622 = vpop.f32.mrf.mxu0
      %v623 = vadd.f32 %v470, %v622
      %624 = vdwg.mxu0
      %625 = vmax.xlane.f32.xlu0 %v586
      %v626 = vpop.xlane.xlu0 %625
      %627 = vmax.xlane.f32.xlu0 %v588
      %v628 = vpop.xlane.xlu0 %627
      %629 = vmax.xlane.f32.xlu0 %v591
      %v630 = vpop.xlane.xlu0 %629
      %631 = vmax.xlane.f32.xlu0 %v593
      %v632 = vpop.xlane.xlu0 %631
      %633 = vmax.xlane.f32.xlu0 %v596
      %v634 = vpop.xlane.xlu0 %633
      %635 = vmax.xlane.f32.xlu0 %v598
      %v636 = vpop.xlane.xlu0 %635
      %637 = vmax.xlane.f32.xlu0 %v601
      %v638 = vpop.xlane.xlu0 %637
      %639 = vmax.xlane.f32.xlu0 %v603
      %v640 = vpop.xlane.xlu0 %639
      %641 = vmax.xlane.f32.xlu0 %v606
      %v642 = vpop.xlane.xlu0 %641
      %643 = vmax.xlane.f32.xlu0 %v608
      %v644 = vpop.xlane.xlu0 %643
      %645 = vmax.xlane.f32.xlu0 %v611
      %v646 = vpop.xlane.xlu0 %645
      %647 = vmax.xlane.f32.xlu0 %v613
      %v648 = vpop.xlane.xlu0 %647
      %649 = vmax.xlane.f32.xlu0 %v616
      %v650 = vpop.xlane.xlu0 %649
      %651 = vmax.xlane.f32.xlu0 %v618
      %v652 = vpop.xlane.xlu0 %651
      %653 = vmax.xlane.f32.xlu0 %v621
      %v654 = vpop.xlane.xlu0 %653
      %655 = vmax.xlane.f32.xlu0 %v623
      %v656 = vpop.xlane.xlu0 %655
      %v657 = vsub.f32 %v586, %v626
      %v658 = vsub.f32 %v588, %v628
      %v659 = vsub.f32 %v591, %v630
      %v660 = vsub.f32 %v593, %v632
      %v661 = vsub.f32 %v596, %v634
      %v662 = vsub.f32 %v598, %v636
      %v663 = vsub.f32 %v601, %v638
      %v664 = vsub.f32 %v603, %v640
      %v665 = vsub.f32 %v606, %v642
      %v666 = vsub.f32 %v608, %v644
      %v667 = vsub.f32 %v611, %v646
      %v668 = vsub.f32 %v613, %v648
      %v669 = vsub.f32 %v616, %v650
      %v670 = vsub.f32 %v618, %v652
      %v671 = vsub.f32 %v621, %v654
      %v672 = vsub.f32 %v623, %v656
      %v673 = vmul.f32 %v657, 1.442695
      %v674 = vpow.pop %v673
      %v675 = vmul.f32 %v658, 1.442695
      %v676 = vpow.pop %v675
      %v677 = vmul.f32 %v659, 1.442695
      %v678 = vpow.pop %v677
      %v679 = vmul.f32 %v660, 1.442695
      %v680 = vpow.pop %v679
      %v681 = vmul.f32 %v661, 1.442695
      %v682 = vpow.pop %v681
      %v683 = vmul.f32 %v662, 1.442695
      %v684 = vpow.pop %v683
      %v685 = vmul.f32 %v663, 1.442695
      %v686 = vpow.pop %v685
      %v687 = vmul.f32 %v664, 1.442695
      %v688 = vpow.pop %v687
      %v689 = vmul.f32 %v665, 1.442695
      %v690 = vpow.pop %v689
      %v691 = vmul.f32 %v666, 1.442695
      %v692 = vpow.pop %v691
      %v693 = vmul.f32 %v667, 1.442695
      %v694 = vpow.pop %v693
      %v695 = vmul.f32 %v668, 1.442695
      %v696 = vpow.pop %v695
      %v697 = vmul.f32 %v669, 1.442695
      %v698 = vpow.pop %v697
      %v699 = vmul.f32 %v670, 1.442695
      %v700 = vpow.pop %v699
      %v701 = vmul.f32 %v671, 1.442695
      %v702 = vpow.pop %v701
      %v703 = vmul.f32 %v672, 1.442695
      %v704 = vpow.pop %v703
      %705 = vadd.xlane.f32.xlu0 %v674
      %v706 = vpop.xlane.xlu0 %705
      %707 = vadd.xlane.f32.xlu0 %v676
      %v708 = vpop.xlane.xlu0 %707
      %709 = vadd.xlane.f32.xlu0 %v678
      %v710 = vpop.xlane.xlu0 %709
      %711 = vadd.xlane.f32.xlu0 %v680
      %v712 = vpop.xlane.xlu0 %711
      %713 = vadd.xlane.f32.xlu0 %v682
      %v714 = vpop.xlane.xlu0 %713
      %715 = vadd.xlane.f32.xlu0 %v684
      %v716 = vpop.xlane.xlu0 %715
      %717 = vadd.xlane.f32.xlu0 %v686
      %v718 = vpop.xlane.xlu0 %717
      %719 = vadd.xlane.f32.xlu0 %v688
      %v720 = vpop.xlane.xlu0 %719
      %721 = vadd.xlane.f32.xlu0 %v690
      %v722 = vpop.xlane.xlu0 %721
      %723 = vadd.xlane.f32.xlu0 %v692
      %v724 = vpop.xlane.xlu0 %723
      %725 = vadd.xlane.f32.xlu0 %v694
      %v726 = vpop.xlane.xlu0 %725
      %727 = vadd.xlane.f32.xlu0 %v696
      %v728 = vpop.xlane.xlu0 %727
      %729 = vadd.xlane.f32.xlu0 %v698
      %v730 = vpop.xlane.xlu0 %729
      %731 = vadd.xlane.f32.xlu0 %v700
      %v732 = vpop.xlane.xlu0 %731
      %733 = vadd.xlane.f32.xlu0 %v702
      %v734 = vpop.xlane.xlu0 %733
      %735 = vadd.xlane.f32.xlu0 %v704
      %v736 = vpop.xlane.xlu0 %735
      %v737 = vrcp.pop %v706
      %v738 = vrcp.pop %v708
      %v739 = vrcp.pop %v710
      %v740 = vrcp.pop %v712
      %v741 = vrcp.pop %v714
      %v742 = vrcp.pop %v716
      %v743 = vrcp.pop %v718
      %v744 = vrcp.pop %v720
      %v745 = vrcp.pop %v722
      %v746 = vrcp.pop %v724
      %v747 = vrcp.pop %v726
      %v748 = vrcp.pop %v728
      %v749 = vrcp.pop %v730
      %v750 = vrcp.pop %v732
      %v751 = vrcp.pop %v734
      %v752 = vrcp.pop %v736
      %v753 = vpack.c.bf16 %v676, %v674
      %v754 = vpack.c.bf16 %v680, %v678
      %v755 = vpack.c.bf16 %v684, %v682
      %v756 = vpack.c.bf16 %v688, %v686
      %v757 = vpack.c.bf16 %v692, %v690
      %v758 = vpack.c.bf16 %v696, %v694
      %v759 = vpack.c.bf16 %v700, %v698
      %v760 = vpack.c.bf16 %v704, %v702
      %761 = vrot.lane.b32.xlu0 %v503, 64
      %v762 = vpop.permute.xlu0 %761
      %763 = vrot.lane.b32.xlu0 %v504, 64
      %v764 = vpop.permute.xlu0 %763
      %765 = vrot.lane.b32.xlu0 %v505, 64
      %v766 = vpop.permute.xlu0 %765
      %767 = vrot.lane.b32.xlu0 %v506, 64
      %v768 = vpop.permute.xlu0 %767
      %769 = vrot.lane.b32.xlu0 %v507, 64
      %v770 = vpop.permute.xlu0 %769
      %771 = vrot.lane.b32.xlu0 %v508, 64
      %v772 = vpop.permute.xlu0 %771
      %773 = vrot.lane.b32.xlu0 %v509, 64
      %v774 = vpop.permute.xlu0 %773
      %775 = vrot.lane.b32.xlu0 %v510, 64
      %v776 = vpop.permute.xlu0 %775
      %785 = vmatpush.bf16.msra.mxu0 %v776
      %786 = vmatpush.bf16.msra.mxu0 %v774
      %787 = vmatpush.bf16.msra.mxu0 %v772
      %788 = vmatpush.bf16.msra.mxu0 %v770
      %789 = vmatpush.bf16.msra.mxu0 %v768
      %790 = vmatpush.bf16.msra.mxu0 %v766
      %791 = vmatpush.bf16.msra.mxu0 %v764
      %792 = vmatpush.bf16.msra.mxu0 %v762
      %793 = vmatmul.bf16.gmra.mxu0 %v753
      %v794 = vpop.f32.mrf.mxu0
      %v795 = vadd.f32 0.0, %v794
      %v796 = vpop.f32.mrf.mxu0
      %v797 = vadd.f32 0.0, %v796
      %798 = vmatmul.bf16.gmra.mxu0 %v754
      %v799 = vpop.f32.mrf.mxu0
      %v800 = vadd.f32 0.0, %v799
      %v801 = vpop.f32.mrf.mxu0
      %v802 = vadd.f32 0.0, %v801
      %803 = vmatmul.bf16.gmra.mxu0 %v755
      %v804 = vpop.f32.mrf.mxu0
      %v805 = vadd.f32 0.0, %v804
      %v806 = vpop.f32.mrf.mxu0
      %v807 = vadd.f32 0.0, %v806
      %808 = vmatmul.bf16.gmra.mxu0 %v756
      %v809 = vpop.f32.mrf.mxu0
      %v810 = vadd.f32 0.0, %v809
      %v811 = vpop.f32.mrf.mxu0
      %v812 = vadd.f32 0.0, %v811
      %813 = vmatmul.bf16.gmra.mxu0 %v757
      %v814 = vpop.f32.mrf.mxu0
      %v815 = vadd.f32 0.0, %v814
      %v816 = vpop.f32.mrf.mxu0
      %v817 = vadd.f32 0.0, %v816
      %818 = vmatmul.bf16.gmra.mxu0 %v758
      %v819 = vpop.f32.mrf.mxu0
      %v820 = vadd.f32 0.0, %v819
      %v821 = vpop.f32.mrf.mxu0
      %v822 = vadd.f32 0.0, %v821
      %823 = vmatmul.bf16.gmra.mxu0 %v759
      %v824 = vpop.f32.mrf.mxu0
      %v825 = vadd.f32 0.0, %v824
      %v826 = vpop.f32.mrf.mxu0
      %v827 = vadd.f32 0.0, %v826
      %828 = vmatmul.bf16.gmra.mxu0 %v760
      %v829 = vpop.f32.mrf.mxu0
      %v830 = vadd.f32 0.0, %v829
      %v831 = vpop.f32.mrf.mxu0
      %v832 = vadd.f32 0.0, %v831
      %833 = vdwg.mxu0
      %v834 = vmul.f32 %v795, %v737
      %v835 = vmul.f32 %v797, %v738
      %v836 = vmul.f32 %v800, %v739
      %v837 = vmul.f32 %v802, %v740
      %v838 = vmul.f32 %v805, %v741
      %v839 = vmul.f32 %v807, %v742
      %v840 = vmul.f32 %v810, %v743
      %v841 = vmul.f32 %v812, %v744
      %v842 = vmul.f32 %v815, %v745
      %v843 = vmul.f32 %v817, %v746
      %v844 = vmul.f32 %v820, %v747
      %v845 = vmul.f32 %v822, %v748
      %v846 = vmul.f32 %v825, %v749
      %v847 = vmul.f32 %v827, %v750
      %v848 = vmul.f32 %v830, %v751
      %v849 = vmul.f32 %v832, %v752
      %v850 = vpack.c.bf16 %v834, %v834
      %v851 = vpack.c.bf16 %v835, %v835
      %v852 = vpack.c.bf16 %v836, %v836
      %v853 = vpack.c.bf16 %v837, %v837
      %v854 = vpack.c.bf16 %v838, %v838
      %v855 = vpack.c.bf16 %v839, %v839
      %v856 = vpack.c.bf16 %v840, %v840
      %v857 = vpack.c.bf16 %v841, %v841
      %v858 = vpack.c.bf16 %v842, %v842
      %v859 = vpack.c.bf16 %v843, %v843
      %v860 = vpack.c.bf16 %v844, %v844
      %v861 = vpack.c.bf16 %v845, %v845
      %v862 = vpack.c.bf16 %v846, %v846
      %v863 = vpack.c.bf16 %v847, %v847
      %v864 = vpack.c.bf16 %v848, %v848
      %v865 = vpack.c.bf16 %v849, %v849
      %866 = vrot.lane.b32.xlu0 %v503, 120
      %v867 = vpop.permute.xlu0 %866
      %868 = vrot.lane.b32.xlu0 %v504, 120
      %v869 = vpop.permute.xlu0 %868
      %870 = vrot.lane.b32.xlu0 %v505, 120
      %v871 = vpop.permute.xlu0 %870
      %872 = vrot.lane.b32.xlu0 %v506, 120
      %v873 = vpop.permute.xlu0 %872
      %874 = vrot.lane.b32.xlu0 %v507, 120
      %v875 = vpop.permute.xlu0 %874
      %876 = vrot.lane.b32.xlu0 %v508, 120
      %v877 = vpop.permute.xlu0 %876
      %878 = vrot.lane.b32.xlu0 %v509, 120
      %v879 = vpop.permute.xlu0 %878
      %880 = vrot.lane.b32.xlu0 %v510, 120
      %v881 = vpop.permute.xlu0 %880
      %882 = vrot.lane.b32.xlu0 %v503, 88
      %v883 = vpop.permute.xlu0 %882
      %884 = vrot.lane.b32.xlu0 %v504, 88
      %v885 = vpop.permute.xlu0 %884
      %886 = vrot.lane.b32.xlu0 %v505, 88
      %v887 = vpop.permute.xlu0 %886
      %888 = vrot.lane.b32.xlu0 %v506, 88
      %v889 = vpop.permute.xlu0 %888
      %890 = vrot.lane.b32.xlu0 %v507, 88
      %v891 = vpop.permute.xlu0 %890
      %892 = vrot.lane.b32.xlu0 %v508, 88
      %v893 = vpop.permute.xlu0 %892
      %894 = vrot.lane.b32.xlu0 %v509, 88
      %v895 = vpop.permute.xlu0 %894
      %896 = vrot.lane.b32.xlu0 %v510, 88
      %v897 = vpop.permute.xlu0 %896
      %v899 = vsel %vm527, %v867, 0
      %v902 = vsel %vm527, %v869, 0
      %v905 = vsel %vm527, %v871, 0
      %v908 = vsel %vm527, %v873, 0
      %v911 = vsel %vm527, %v875, 0
      %v914 = vsel %vm527, %v877, 0
      %v917 = vsel %vm527, %v879, 0
      %v920 = vsel %vm527, %v881, 0
      %v923 = vsel %vm527, %v883, 0
      %v926 = vsel %vm527, %v885, 0
      %v929 = vsel %vm527, %v887, 0
      %v932 = vsel %vm527, %v889, 0
      %v935 = vsel %vm527, %v891, 0
      %v938 = vsel %vm527, %v893, 0
      %v941 = vsel %vm527, %v895, 0
      %v944 = vsel %vm527, %v897, 0
      %946 = vmatpush.bf16.xpose.msra.mxu0 %v944
      %947 = vmatpush.bf16.xpose.msra.mxu0 %v941
      %948 = vmatpush.bf16.xpose.msra.mxu0 %v938
      %949 = vmatpush.bf16.xpose.msra.mxu0 %v935
      %950 = vmatpush.bf16.xpose.msra.mxu0 %v932
      %951 = vmatpush.bf16.xpose.msra.mxu0 %v929
      %952 = vmatpush.bf16.xpose.msra.mxu0 %v926
      %953 = vmatpush.bf16.xpose.msra.mxu0 %v923
      %954 = vmatmul.bf16.gmra.mxu0 %v899
      %v955 = vpop.f32.mrf.mxu0
      %v956 = vadd.f32 %v455, %v955
      %v957 = vpop.f32.mrf.mxu0
      %v958 = vadd.f32 %v456, %v957
      %959 = vmatmul.bf16.gmra.mxu0 %v902
      %v960 = vpop.f32.mrf.mxu0
      %v961 = vadd.f32 %v457, %v960
      %v962 = vpop.f32.mrf.mxu0
      %v963 = vadd.f32 %v458, %v962
      %964 = vmatmul.bf16.gmra.mxu0 %v905
      %v965 = vpop.f32.mrf.mxu0
      %v966 = vadd.f32 %v459, %v965
      %v967 = vpop.f32.mrf.mxu0
      %v968 = vadd.f32 %v460, %v967
      %969 = vmatmul.bf16.gmra.mxu0 %v908
      %v970 = vpop.f32.mrf.mxu0
      %v971 = vadd.f32 %v461, %v970
      %v972 = vpop.f32.mrf.mxu0
      %v973 = vadd.f32 %v462, %v972
      %974 = vmatmul.bf16.gmra.mxu0 %v911
      %v975 = vpop.f32.mrf.mxu0
      %v976 = vadd.f32 %v463, %v975
      %v977 = vpop.f32.mrf.mxu0
      %v978 = vadd.f32 %v464, %v977
      %979 = vmatmul.bf16.gmra.mxu0 %v914
      %v980 = vpop.f32.mrf.mxu0
      %v981 = vadd.f32 %v465, %v980
      %v982 = vpop.f32.mrf.mxu0
      %v983 = vadd.f32 %v466, %v982
      %984 = vmatmul.bf16.gmra.mxu0 %v917
      %v985 = vpop.f32.mrf.mxu0
      %v986 = vadd.f32 %v467, %v985
      %v987 = vpop.f32.mrf.mxu0
      %v988 = vadd.f32 %v468, %v987
      %989 = vmatmul.bf16.gmra.mxu0 %v920
      %v990 = vpop.f32.mrf.mxu0
      %v991 = vadd.f32 %v469, %v990
      %v992 = vpop.f32.mrf.mxu0
      %v993 = vadd.f32 %v470, %v992
      %994 = vdwg.mxu0
      %995 = vmax.xlane.f32.xlu0 %v956
      %v996 = vpop.xlane.xlu0 %995
      %997 = vmax.xlane.f32.xlu0 %v958
      %v998 = vpop.xlane.xlu0 %997
      %999 = vmax.xlane.f32.xlu0 %v961
      %v1000 = vpop.xlane.xlu0 %999
      %1001 = vmax.xlane.f32.xlu0 %v963
      %v1002 = vpop.xlane.xlu0 %1001
      %1003 = vmax.xlane.f32.xlu0 %v966
      %v1004 = vpop.xlane.xlu0 %1003
      %1005 = vmax.xlane.f32.xlu0 %v968
      %v1006 = vpop.xlane.xlu0 %1005
      %1007 = vmax.xlane.f32.xlu0 %v971
      %v1008 = vpop.xlane.xlu0 %1007
      %1009 = vmax.xlane.f32.xlu0 %v973
      %v1010 = vpop.xlane.xlu0 %1009
      %1011 = vmax.xlane.f32.xlu0 %v976
      %v1012 = vpop.xlane.xlu0 %1011
      %1013 = vmax.xlane.f32.xlu0 %v978
      %v1014 = vpop.xlane.xlu0 %1013
      %1015 = vmax.xlane.f32.xlu0 %v981
      %v1016 = vpop.xlane.xlu0 %1015
      %1017 = vmax.xlane.f32.xlu0 %v983
      %v1018 = vpop.xlane.xlu0 %1017
      %1019 = vmax.xlane.f32.xlu0 %v986
      %v1020 = vpop.xlane.xlu0 %1019
      %1021 = vmax.xlane.f32.xlu0 %v988
      %v1022 = vpop.xlane.xlu0 %1021
      %1023 = vmax.xlane.f32.xlu0 %v991
      %v1024 = vpop.xlane.xlu0 %1023
      %1025 = vmax.xlane.f32.xlu0 %v993
      %v1026 = vpop.xlane.xlu0 %1025
      %v1027 = vsub.f32 %v956, %v996
      %v1028 = vsub.f32 %v958, %v998
      %v1029 = vsub.f32 %v961, %v1000
      %v1030 = vsub.f32 %v963, %v1002
      %v1031 = vsub.f32 %v966, %v1004
      %v1032 = vsub.f32 %v968, %v1006
      %v1033 = vsub.f32 %v971, %v1008
      %v1034 = vsub.f32 %v973, %v1010
      %v1035 = vsub.f32 %v976, %v1012
      %v1036 = vsub.f32 %v978, %v1014
      %v1037 = vsub.f32 %v981, %v1016
      %v1038 = vsub.f32 %v983, %v1018
      %v1039 = vsub.f32 %v986, %v1020
      %v1040 = vsub.f32 %v988, %v1022
      %v1041 = vsub.f32 %v991, %v1024
      %v1042 = vsub.f32 %v993, %v1026
      %v1043 = vmul.f32 %v1027, 1.442695
      %v1044 = vpow.pop %v1043
      %v1045 = vmul.f32 %v1028, 1.442695
      %v1046 = vpow.pop %v1045
      %v1047 = vmul.f32 %v1029, 1.442695
      %v1048 = vpow.pop %v1047
      %v1049 = vmul.f32 %v1030, 1.442695
      %v1050 = vpow.pop %v1049
      %v1051 = vmul.f32 %v1031, 1.442695
      %v1052 = vpow.pop %v1051
      %v1053 = vmul.f32 %v1032, 1.442695
      %v1054 = vpow.pop %v1053
      %v1055 = vmul.f32 %v1033, 1.442695
      %v1056 = vpow.pop %v1055
      %v1057 = vmul.f32 %v1034, 1.442695
      %v1058 = vpow.pop %v1057
      %v1059 = vmul.f32 %v1035, 1.442695
      %v1060 = vpow.pop %v1059
      %v1061 = vmul.f32 %v1036, 1.442695
      %v1062 = vpow.pop %v1061
      %v1063 = vmul.f32 %v1037, 1.442695
      %v1064 = vpow.pop %v1063
      %v1065 = vmul.f32 %v1038, 1.442695
      %v1066 = vpow.pop %v1065
      %v1067 = vmul.f32 %v1039, 1.442695
      %v1068 = vpow.pop %v1067
      %v1069 = vmul.f32 %v1040, 1.442695
      %v1070 = vpow.pop %v1069
      %v1071 = vmul.f32 %v1041, 1.442695
      %v1072 = vpow.pop %v1071
      %v1073 = vmul.f32 %v1042, 1.442695
      %v1074 = vpow.pop %v1073
      %1075 = vadd.xlane.f32.xlu0 %v1044
      %v1076 = vpop.xlane.xlu0 %1075
      %1077 = vadd.xlane.f32.xlu0 %v1046
      %v1078 = vpop.xlane.xlu0 %1077
      %1079 = vadd.xlane.f32.xlu0 %v1048
      %v1080 = vpop.xlane.xlu0 %1079
      %1081 = vadd.xlane.f32.xlu0 %v1050
      %v1082 = vpop.xlane.xlu0 %1081
      %1083 = vadd.xlane.f32.xlu0 %v1052
      %v1084 = vpop.xlane.xlu0 %1083
      %1085 = vadd.xlane.f32.xlu0 %v1054
      %v1086 = vpop.xlane.xlu0 %1085
      %1087 = vadd.xlane.f32.xlu0 %v1056
      %v1088 = vpop.xlane.xlu0 %1087
      %1089 = vadd.xlane.f32.xlu0 %v1058
      %v1090 = vpop.xlane.xlu0 %1089
      %1091 = vadd.xlane.f32.xlu0 %v1060
      %v1092 = vpop.xlane.xlu0 %1091
      %1093 = vadd.xlane.f32.xlu0 %v1062
      %v1094 = vpop.xlane.xlu0 %1093
      %1095 = vadd.xlane.f32.xlu0 %v1064
      %v1096 = vpop.xlane.xlu0 %1095
      %1097 = vadd.xlane.f32.xlu0 %v1066
      %v1098 = vpop.xlane.xlu0 %1097
      %1099 = vadd.xlane.f32.xlu0 %v1068
      %v1100 = vpop.xlane.xlu0 %1099
      %1101 = vadd.xlane.f32.xlu0 %v1070
      %v1102 = vpop.xlane.xlu0 %1101
      %1103 = vadd.xlane.f32.xlu0 %v1072
      %v1104 = vpop.xlane.xlu0 %1103
      %1105 = vadd.xlane.f32.xlu0 %v1074
      %v1106 = vpop.xlane.xlu0 %1105
      %v1107 = vrcp.pop %v1076
      %v1108 = vrcp.pop %v1078
      %v1109 = vrcp.pop %v1080
      %v1110 = vrcp.pop %v1082
      %v1111 = vrcp.pop %v1084
      %v1112 = vrcp.pop %v1086
      %v1113 = vrcp.pop %v1088
      %v1114 = vrcp.pop %v1090
      %v1115 = vrcp.pop %v1092
      %v1116 = vrcp.pop %v1094
      %v1117 = vrcp.pop %v1096
      %v1118 = vrcp.pop %v1098
      %v1119 = vrcp.pop %v1100
      %v1120 = vrcp.pop %v1102
      %v1121 = vrcp.pop %v1104
      %v1122 = vrcp.pop %v1106
      %v1123 = vpack.c.bf16 %v1046, %v1044
      %v1124 = vpack.c.bf16 %v1050, %v1048
      %v1125 = vpack.c.bf16 %v1054, %v1052
      %v1126 = vpack.c.bf16 %v1058, %v1056
      %v1127 = vpack.c.bf16 %v1062, %v1060
      %v1128 = vpack.c.bf16 %v1066, %v1064
      %v1129 = vpack.c.bf16 %v1070, %v1068
      %v1130 = vpack.c.bf16 %v1074, %v1072
      %1131 = vrot.lane.b32.xlu0 %v503, 56
      %v1132 = vpop.permute.xlu0 %1131
      %1133 = vrot.lane.b32.xlu0 %v504, 56
      %v1134 = vpop.permute.xlu0 %1133
      %1135 = vrot.lane.b32.xlu0 %v505, 56
      %v1136 = vpop.permute.xlu0 %1135
      %1137 = vrot.lane.b32.xlu0 %v506, 56
      %v1138 = vpop.permute.xlu0 %1137
      %1139 = vrot.lane.b32.xlu0 %v507, 56
      %v1140 = vpop.permute.xlu0 %1139
      %1141 = vrot.lane.b32.xlu0 %v508, 56
      %v1142 = vpop.permute.xlu0 %1141
      %1143 = vrot.lane.b32.xlu0 %v509, 56
      %v1144 = vpop.permute.xlu0 %1143
      %1145 = vrot.lane.b32.xlu0 %v510, 56
      %v1146 = vpop.permute.xlu0 %1145
      %1155 = vmatpush.bf16.msra.mxu0 %v1146
      %1156 = vmatpush.bf16.msra.mxu0 %v1144
      %1157 = vmatpush.bf16.msra.mxu0 %v1142
      %1158 = vmatpush.bf16.msra.mxu0 %v1140
      %1159 = vmatpush.bf16.msra.mxu0 %v1138
      %1160 = vmatpush.bf16.msra.mxu0 %v1136
      %1161 = vmatpush.bf16.msra.mxu0 %v1134
      %1162 = vmatpush.bf16.msra.mxu0 %v1132
      %1163 = vmatmul.bf16.gmra.mxu0 %v1123
      %v1164 = vpop.f32.mrf.mxu0
      %v1165 = vadd.f32 0.0, %v1164
      %v1166 = vpop.f32.mrf.mxu0
      %v1167 = vadd.f32 0.0, %v1166
      %1168 = vmatmul.bf16.gmra.mxu0 %v1124
      %v1169 = vpop.f32.mrf.mxu0
      %v1170 = vadd.f32 0.0, %v1169
      %v1171 = vpop.f32.mrf.mxu0
      %v1172 = vadd.f32 0.0, %v1171
      %1173 = vmatmul.bf16.gmra.mxu0 %v1125
      %v1174 = vpop.f32.mrf.mxu0
      %v1175 = vadd.f32 0.0, %v1174
      %v1176 = vpop.f32.mrf.mxu0
      %v1177 = vadd.f32 0.0, %v1176
      %1178 = vmatmul.bf16.gmra.mxu0 %v1126
      %v1179 = vpop.f32.mrf.mxu0
      %v1180 = vadd.f32 0.0, %v1179
      %v1181 = vpop.f32.mrf.mxu0
      %v1182 = vadd.f32 0.0, %v1181
      %1183 = vmatmul.bf16.gmra.mxu0 %v1127
      %v1184 = vpop.f32.mrf.mxu0
      %v1185 = vadd.f32 0.0, %v1184
      %v1186 = vpop.f32.mrf.mxu0
      %v1187 = vadd.f32 0.0, %v1186
      %1188 = vmatmul.bf16.gmra.mxu0 %v1128
      %v1189 = vpop.f32.mrf.mxu0
      %v1190 = vadd.f32 0.0, %v1189
      %v1191 = vpop.f32.mrf.mxu0
      %v1192 = vadd.f32 0.0, %v1191
      %1193 = vmatmul.bf16.gmra.mxu0 %v1129
      %v1194 = vpop.f32.mrf.mxu0
      %v1195 = vadd.f32 0.0, %v1194
      %v1196 = vpop.f32.mrf.mxu0
      %v1197 = vadd.f32 0.0, %v1196
      %1198 = vmatmul.bf16.gmra.mxu0 %v1130
      %v1199 = vpop.f32.mrf.mxu0
      %v1200 = vadd.f32 0.0, %v1199
      %v1201 = vpop.f32.mrf.mxu0
      %v1202 = vadd.f32 0.0, %v1201
      %1203 = vdwg.mxu0
      %v1204 = vmul.f32 %v1165, %v1107
      %v1205 = vmul.f32 %v1167, %v1108
      %v1206 = vmul.f32 %v1170, %v1109
      %v1207 = vmul.f32 %v1172, %v1110
      %v1208 = vmul.f32 %v1175, %v1111
      %v1209 = vmul.f32 %v1177, %v1112
      %v1210 = vmul.f32 %v1180, %v1113
      %v1211 = vmul.f32 %v1182, %v1114
      %v1212 = vmul.f32 %v1185, %v1115
      %v1213 = vmul.f32 %v1187, %v1116
      %v1214 = vmul.f32 %v1190, %v1117
      %v1215 = vmul.f32 %v1192, %v1118
      %v1216 = vmul.f32 %v1195, %v1119
      %v1217 = vmul.f32 %v1197, %v1120
      %v1218 = vmul.f32 %v1200, %v1121
      %v1219 = vmul.f32 %v1202, %v1122
      %v1220 = vpack.c.bf16 %v1204, %v1204
      %v1221 = vpack.c.bf16 %v1205, %v1205
      %v1222 = vpack.c.bf16 %v1206, %v1206
      %v1223 = vpack.c.bf16 %v1207, %v1207
      %v1224 = vpack.c.bf16 %v1208, %v1208
      %v1225 = vpack.c.bf16 %v1209, %v1209
      %v1226 = vpack.c.bf16 %v1210, %v1210
      %v1227 = vpack.c.bf16 %v1211, %v1211
      %v1228 = vpack.c.bf16 %v1212, %v1212
      %v1229 = vpack.c.bf16 %v1213, %v1213
      %v1230 = vpack.c.bf16 %v1214, %v1214
      %v1231 = vpack.c.bf16 %v1215, %v1215
      %v1232 = vpack.c.bf16 %v1216, %v1216
      %v1233 = vpack.c.bf16 %v1217, %v1217
      %v1234 = vpack.c.bf16 %v1218, %v1218
      %v1235 = vpack.c.bf16 %v1219, %v1219
      %1236 = vrot.lane.b32.xlu0 %v503, 112
      %v1237 = vpop.permute.xlu0 %1236
      %1238 = vrot.lane.b32.xlu0 %v504, 112
      %v1239 = vpop.permute.xlu0 %1238
      %1240 = vrot.lane.b32.xlu0 %v505, 112
      %v1241 = vpop.permute.xlu0 %1240
      %1242 = vrot.lane.b32.xlu0 %v506, 112
      %v1243 = vpop.permute.xlu0 %1242
      %1244 = vrot.lane.b32.xlu0 %v507, 112
      %v1245 = vpop.permute.xlu0 %1244
      %1246 = vrot.lane.b32.xlu0 %v508, 112
      %v1247 = vpop.permute.xlu0 %1246
      %1248 = vrot.lane.b32.xlu0 %v509, 112
      %v1249 = vpop.permute.xlu0 %1248
      %1250 = vrot.lane.b32.xlu0 %v510, 112
      %v1251 = vpop.permute.xlu0 %1250
      %1252 = vrot.lane.b32.xlu0 %v503, 80
      %v1253 = vpop.permute.xlu0 %1252
      %1254 = vrot.lane.b32.xlu0 %v504, 80
      %v1255 = vpop.permute.xlu0 %1254
      %1256 = vrot.lane.b32.xlu0 %v505, 80
      %v1257 = vpop.permute.xlu0 %1256
      %1258 = vrot.lane.b32.xlu0 %v506, 80
      %v1259 = vpop.permute.xlu0 %1258
      %1260 = vrot.lane.b32.xlu0 %v507, 80
      %v1261 = vpop.permute.xlu0 %1260
      %1262 = vrot.lane.b32.xlu0 %v508, 80
      %v1263 = vpop.permute.xlu0 %1262
      %1264 = vrot.lane.b32.xlu0 %v509, 80
      %v1265 = vpop.permute.xlu0 %1264
      %1266 = vrot.lane.b32.xlu0 %v510, 80
      %v1267 = vpop.permute.xlu0 %1266
      %v1269 = vsel %vm527, %v1237, 0
      %v1272 = vsel %vm527, %v1239, 0
      %v1275 = vsel %vm527, %v1241, 0
      %v1278 = vsel %vm527, %v1243, 0
      %v1281 = vsel %vm527, %v1245, 0
      %v1284 = vsel %vm527, %v1247, 0
      %v1287 = vsel %vm527, %v1249, 0
      %v1290 = vsel %vm527, %v1251, 0
      %v1293 = vsel %vm527, %v1253, 0
      %v1296 = vsel %vm527, %v1255, 0
      %v1299 = vsel %vm527, %v1257, 0
      %v1302 = vsel %vm527, %v1259, 0
      %v1305 = vsel %vm527, %v1261, 0
      %v1308 = vsel %vm527, %v1263, 0
      %v1311 = vsel %vm527, %v1265, 0
      %v1314 = vsel %vm527, %v1267, 0
      %1316 = vmatpush.bf16.xpose.msra.mxu0 %v1314
      %1317 = vmatpush.bf16.xpose.msra.mxu0 %v1311
      %1318 = vmatpush.bf16.xpose.msra.mxu0 %v1308
      %1319 = vmatpush.bf16.xpose.msra.mxu0 %v1305
      %1320 = vmatpush.bf16.xpose.msra.mxu0 %v1302
      %1321 = vmatpush.bf16.xpose.msra.mxu0 %v1299
      %1322 = vmatpush.bf16.xpose.msra.mxu0 %v1296
      %1323 = vmatpush.bf16.xpose.msra.mxu0 %v1293
      %1324 = vmatmul.bf16.gmra.mxu0 %v1269
      %v1325 = vpop.f32.mrf.mxu0
      %v1326 = vadd.f32 %v455, %v1325
      %v1327 = vpop.f32.mrf.mxu0
      %v1328 = vadd.f32 %v456, %v1327
      %1329 = vmatmul.bf16.gmra.mxu0 %v1272
      %v1330 = vpop.f32.mrf.mxu0
      %v1331 = vadd.f32 %v457, %v1330
      %v1332 = vpop.f32.mrf.mxu0
      %v1333 = vadd.f32 %v458, %v1332
      %1334 = vmatmul.bf16.gmra.mxu0 %v1275
      %v1335 = vpop.f32.mrf.mxu0
      %v1336 = vadd.f32 %v459, %v1335
      %v1337 = vpop.f32.mrf.mxu0
      %v1338 = vadd.f32 %v460, %v1337
      %1339 = vmatmul.bf16.gmra.mxu0 %v1278
      %v1340 = vpop.f32.mrf.mxu0
      %v1341 = vadd.f32 %v461, %v1340
      %v1342 = vpop.f32.mrf.mxu0
      %v1343 = vadd.f32 %v462, %v1342
      %1344 = vmatmul.bf16.gmra.mxu0 %v1281
      %v1345 = vpop.f32.mrf.mxu0
      %v1346 = vadd.f32 %v463, %v1345
      %v1347 = vpop.f32.mrf.mxu0
      %v1348 = vadd.f32 %v464, %v1347
      %1349 = vmatmul.bf16.gmra.mxu0 %v1284
      %v1350 = vpop.f32.mrf.mxu0
      %v1351 = vadd.f32 %v465, %v1350
      %v1352 = vpop.f32.mrf.mxu0
      %v1353 = vadd.f32 %v466, %v1352
      %1354 = vmatmul.bf16.gmra.mxu0 %v1287
      %v1355 = vpop.f32.mrf.mxu0
      %v1356 = vadd.f32 %v467, %v1355
      %v1357 = vpop.f32.mrf.mxu0
      %v1358 = vadd.f32 %v468, %v1357
      %1359 = vmatmul.bf16.gmra.mxu0 %v1290
      %v1360 = vpop.f32.mrf.mxu0
      %v1361 = vadd.f32 %v469, %v1360
      %v1362 = vpop.f32.mrf.mxu0
      %v1363 = vadd.f32 %v470, %v1362
      %1364 = vdwg.mxu0
      %1365 = vmax.xlane.f32.xlu0 %v1326
      %v1366 = vpop.xlane.xlu0 %1365
      %1367 = vmax.xlane.f32.xlu0 %v1328
      %v1368 = vpop.xlane.xlu0 %1367
      %1369 = vmax.xlane.f32.xlu0 %v1331
      %v1370 = vpop.xlane.xlu0 %1369
      %1371 = vmax.xlane.f32.xlu0 %v1333
      %v1372 = vpop.xlane.xlu0 %1371
      %1373 = vmax.xlane.f32.xlu0 %v1336
      %v1374 = vpop.xlane.xlu0 %1373
      %1375 = vmax.xlane.f32.xlu0 %v1338
      %v1376 = vpop.xlane.xlu0 %1375
      %1377 = vmax.xlane.f32.xlu0 %v1341
      %v1378 = vpop.xlane.xlu0 %1377
      %1379 = vmax.xlane.f32.xlu0 %v1343
      %v1380 = vpop.xlane.xlu0 %1379
      %1381 = vmax.xlane.f32.xlu0 %v1346
      %v1382 = vpop.xlane.xlu0 %1381
      %1383 = vmax.xlane.f32.xlu0 %v1348
      %v1384 = vpop.xlane.xlu0 %1383
      %1385 = vmax.xlane.f32.xlu0 %v1351
      %v1386 = vpop.xlane.xlu0 %1385
      %1387 = vmax.xlane.f32.xlu0 %v1353
      %v1388 = vpop.xlane.xlu0 %1387
      %1389 = vmax.xlane.f32.xlu0 %v1356
      %v1390 = vpop.xlane.xlu0 %1389
      %1391 = vmax.xlane.f32.xlu0 %v1358
      %v1392 = vpop.xlane.xlu0 %1391
      %1393 = vmax.xlane.f32.xlu0 %v1361
      %v1394 = vpop.xlane.xlu0 %1393
      %1395 = vmax.xlane.f32.xlu0 %v1363
      %v1396 = vpop.xlane.xlu0 %1395
      %v1397 = vsub.f32 %v1326, %v1366
      %v1398 = vsub.f32 %v1328, %v1368
      %v1399 = vsub.f32 %v1331, %v1370
      %v1400 = vsub.f32 %v1333, %v1372
      %v1401 = vsub.f32 %v1336, %v1374
      %v1402 = vsub.f32 %v1338, %v1376
      %v1403 = vsub.f32 %v1341, %v1378
      %v1404 = vsub.f32 %v1343, %v1380
      %v1405 = vsub.f32 %v1346, %v1382
      %v1406 = vsub.f32 %v1348, %v1384
      %v1407 = vsub.f32 %v1351, %v1386
      %v1408 = vsub.f32 %v1353, %v1388
      %v1409 = vsub.f32 %v1356, %v1390
      %v1410 = vsub.f32 %v1358, %v1392
      %v1411 = vsub.f32 %v1361, %v1394
      %v1412 = vsub.f32 %v1363, %v1396
      %v1413 = vmul.f32 %v1397, 1.442695
      %v1414 = vpow.pop %v1413
      %v1415 = vmul.f32 %v1398, 1.442695
      %v1416 = vpow.pop %v1415
      %v1417 = vmul.f32 %v1399, 1.442695
      %v1418 = vpow.pop %v1417
      %v1419 = vmul.f32 %v1400, 1.442695
      %v1420 = vpow.pop %v1419
      %v1421 = vmul.f32 %v1401, 1.442695
      %v1422 = vpow.pop %v1421
      %v1423 = vmul.f32 %v1402, 1.442695
      %v1424 = vpow.pop %v1423
      %v1425 = vmul.f32 %v1403, 1.442695
      %v1426 = vpow.pop %v1425
      %v1427 = vmul.f32 %v1404, 1.442695
      %v1428 = vpow.pop %v1427
      %v1429 = vmul.f32 %v1405, 1.442695
      %v1430 = vpow.pop %v1429
      %v1431 = vmul.f32 %v1406, 1.442695
      %v1432 = vpow.pop %v1431
      %v1433 = vmul.f32 %v1407, 1.442695
      %v1434 = vpow.pop %v1433
      %v1435 = vmul.f32 %v1408, 1.442695
      %v1436 = vpow.pop %v1435
      %v1437 = vmul.f32 %v1409, 1.442695
      %v1438 = vpow.pop %v1437
      %v1439 = vmul.f32 %v1410, 1.442695
      %v1440 = vpow.pop %v1439
      %v1441 = vmul.f32 %v1411, 1.442695
      %v1442 = vpow.pop %v1441
      %v1443 = vmul.f32 %v1412, 1.442695
      %v1444 = vpow.pop %v1443
      %1445 = vadd.xlane.f32.xlu0 %v1414
      %v1446 = vpop.xlane.xlu0 %1445
      %1447 = vadd.xlane.f32.xlu0 %v1416
      %v1448 = vpop.xlane.xlu0 %1447
      %1449 = vadd.xlane.f32.xlu0 %v1418
      %v1450 = vpop.xlane.xlu0 %1449
      %1451 = vadd.xlane.f32.xlu0 %v1420
      %v1452 = vpop.xlane.xlu0 %1451
      %1453 = vadd.xlane.f32.xlu0 %v1422
      %v1454 = vpop.xlane.xlu0 %1453
      %1455 = vadd.xlane.f32.xlu0 %v1424
      %v1456 = vpop.xlane.xlu0 %1455
      %1457 = vadd.xlane.f32.xlu0 %v1426
      %v1458 = vpop.xlane.xlu0 %1457
      %1459 = vadd.xlane.f32.xlu0 %v1428
      %v1460 = vpop.xlane.xlu0 %1459
      %1461 = vadd.xlane.f32.xlu0 %v1430
      %v1462 = vpop.xlane.xlu0 %1461
      %1463 = vadd.xlane.f32.xlu0 %v1432
      %v1464 = vpop.xlane.xlu0 %1463
      %1465 = vadd.xlane.f32.xlu0 %v1434
      %v1466 = vpop.xlane.xlu0 %1465
      %1467 = vadd.xlane.f32.xlu0 %v1436
      %v1468 = vpop.xlane.xlu0 %1467
      %1469 = vadd.xlane.f32.xlu0 %v1438
      %v1470 = vpop.xlane.xlu0 %1469
      %1471 = vadd.xlane.f32.xlu0 %v1440
      %v1472 = vpop.xlane.xlu0 %1471
      %1473 = vadd.xlane.f32.xlu0 %v1442
      %v1474 = vpop.xlane.xlu0 %1473
      %1475 = vadd.xlane.f32.xlu0 %v1444
      %v1476 = vpop.xlane.xlu0 %1475
      %v1477 = vrcp.pop %v1446
      %v1478 = vrcp.pop %v1448
      %v1479 = vrcp.pop %v1450
      %v1480 = vrcp.pop %v1452
      %v1481 = vrcp.pop %v1454
      %v1482 = vrcp.pop %v1456
      %v1483 = vrcp.pop %v1458
      %v1484 = vrcp.pop %v1460
      %v1485 = vrcp.pop %v1462
      %v1486 = vrcp.pop %v1464
      %v1487 = vrcp.pop %v1466
      %v1488 = vrcp.pop %v1468
      %v1489 = vrcp.pop %v1470
      %v1490 = vrcp.pop %v1472
      %v1491 = vrcp.pop %v1474
      %v1492 = vrcp.pop %v1476
      %v1493 = vpack.c.bf16 %v1416, %v1414
      %v1494 = vpack.c.bf16 %v1420, %v1418
      %v1495 = vpack.c.bf16 %v1424, %v1422
      %v1496 = vpack.c.bf16 %v1428, %v1426
      %v1497 = vpack.c.bf16 %v1432, %v1430
      %v1498 = vpack.c.bf16 %v1436, %v1434
      %v1499 = vpack.c.bf16 %v1440, %v1438
      %v1500 = vpack.c.bf16 %v1444, %v1442
      %1501 = vrot.lane.b32.xlu0 %v503, 48
      %v1502 = vpop.permute.xlu0 %1501
      %1503 = vrot.lane.b32.xlu0 %v504, 48
      %v1504 = vpop.permute.xlu0 %1503
      %1505 = vrot.lane.b32.xlu0 %v505, 48
      %v1506 = vpop.permute.xlu0 %1505
      %1507 = vrot.lane.b32.xlu0 %v506, 48
      %v1508 = vpop.permute.xlu0 %1507
      %1509 = vrot.lane.b32.xlu0 %v507, 48
      %v1510 = vpop.permute.xlu0 %1509
      %1511 = vrot.lane.b32.xlu0 %v508, 48
      %v1512 = vpop.permute.xlu0 %1511
      %1513 = vrot.lane.b32.xlu0 %v509, 48
      %v1514 = vpop.permute.xlu0 %1513
      %1515 = vrot.lane.b32.xlu0 %v510, 48
      %v1516 = vpop.permute.xlu0 %1515
      %1525 = vmatpush.bf16.msra.mxu0 %v1516
      %1526 = vmatpush.bf16.msra.mxu0 %v1514
      %1527 = vmatpush.bf16.msra.mxu0 %v1512
      %1528 = vmatpush.bf16.msra.mxu0 %v1510
      %1529 = vmatpush.bf16.msra.mxu0 %v1508
      %1530 = vmatpush.bf16.msra.mxu0 %v1506
      %1531 = vmatpush.bf16.msra.mxu0 %v1504
      %1532 = vmatpush.bf16.msra.mxu0 %v1502
      %1533 = vmatmul.bf16.gmra.mxu0 %v1493
      %v1534 = vpop.f32.mrf.mxu0
      %v1535 = vadd.f32 0.0, %v1534
      %v1536 = vpop.f32.mrf.mxu0
      %v1537 = vadd.f32 0.0, %v1536
      %1538 = vmatmul.bf16.gmra.mxu0 %v1494
      %v1539 = vpop.f32.mrf.mxu0
      %v1540 = vadd.f32 0.0, %v1539
      %v1541 = vpop.f32.mrf.mxu0
      %v1542 = vadd.f32 0.0, %v1541
      %1543 = vmatmul.bf16.gmra.mxu0 %v1495
      %v1544 = vpop.f32.mrf.mxu0
      %v1545 = vadd.f32 0.0, %v1544
      %v1546 = vpop.f32.mrf.mxu0
      %v1547 = vadd.f32 0.0, %v1546
      %1548 = vmatmul.bf16.gmra.mxu0 %v1496
      %v1549 = vpop.f32.mrf.mxu0
      %v1550 = vadd.f32 0.0, %v1549
      %v1551 = vpop.f32.mrf.mxu0
      %v1552 = vadd.f32 0.0, %v1551
      %1553 = vmatmul.bf16.gmra.mxu0 %v1497
      %v1554 = vpop.f32.mrf.mxu0
      %v1555 = vadd.f32 0.0, %v1554
      %v1556 = vpop.f32.mrf.mxu0
      %v1557 = vadd.f32 0.0, %v1556
      %1558 = vmatmul.bf16.gmra.mxu0 %v1498
      %v1559 = vpop.f32.mrf.mxu0
      %v1560 = vadd.f32 0.0, %v1559
      %v1561 = vpop.f32.mrf.mxu0
      %v1562 = vadd.f32 0.0, %v1561
      %1563 = vmatmul.bf16.gmra.mxu0 %v1499
      %v1564 = vpop.f32.mrf.mxu0
      %v1565 = vadd.f32 0.0, %v1564
      %v1566 = vpop.f32.mrf.mxu0
      %v1567 = vadd.f32 0.0, %v1566
      %1568 = vmatmul.bf16.gmra.mxu0 %v1500
      %v1569 = vpop.f32.mrf.mxu0
      %v1570 = vadd.f32 0.0, %v1569
      %v1571 = vpop.f32.mrf.mxu0
      %v1572 = vadd.f32 0.0, %v1571
      %1573 = vdwg.mxu0
      %v1574 = vmul.f32 %v1535, %v1477
      %v1575 = vmul.f32 %v1537, %v1478
      %v1576 = vmul.f32 %v1540, %v1479
      %v1577 = vmul.f32 %v1542, %v1480
      %v1578 = vmul.f32 %v1545, %v1481
      %v1579 = vmul.f32 %v1547, %v1482
      %v1580 = vmul.f32 %v1550, %v1483
      %v1581 = vmul.f32 %v1552, %v1484
      %v1582 = vmul.f32 %v1555, %v1485
      %v1583 = vmul.f32 %v1557, %v1486
      %v1584 = vmul.f32 %v1560, %v1487
      %v1585 = vmul.f32 %v1562, %v1488
      %v1586 = vmul.f32 %v1565, %v1489
      %v1587 = vmul.f32 %v1567, %v1490
      %v1588 = vmul.f32 %v1570, %v1491
      %v1589 = vmul.f32 %v1572, %v1492
      %v1590 = vpack.c.bf16 %v1574, %v1574
      %v1591 = vpack.c.bf16 %v1575, %v1575
      %v1592 = vpack.c.bf16 %v1576, %v1576
      %v1593 = vpack.c.bf16 %v1577, %v1577
      %v1594 = vpack.c.bf16 %v1578, %v1578
      %v1595 = vpack.c.bf16 %v1579, %v1579
      %v1596 = vpack.c.bf16 %v1580, %v1580
      %v1597 = vpack.c.bf16 %v1581, %v1581
      %v1598 = vpack.c.bf16 %v1582, %v1582
      %v1599 = vpack.c.bf16 %v1583, %v1583
      %v1600 = vpack.c.bf16 %v1584, %v1584
      %v1601 = vpack.c.bf16 %v1585, %v1585
      %v1602 = vpack.c.bf16 %v1586, %v1586
      %v1603 = vpack.c.bf16 %v1587, %v1587
      %v1604 = vpack.c.bf16 %v1588, %v1588
      %v1605 = vpack.c.bf16 %v1589, %v1589
      %1606 = vrot.lane.b32.xlu0 %v503, 104
      %v1607 = vpop.permute.xlu0 %1606
      %1608 = vrot.lane.b32.xlu0 %v504, 104
      %v1609 = vpop.permute.xlu0 %1608
      %1610 = vrot.lane.b32.xlu0 %v505, 104
      %v1611 = vpop.permute.xlu0 %1610
      %1612 = vrot.lane.b32.xlu0 %v506, 104
      %v1613 = vpop.permute.xlu0 %1612
      %1614 = vrot.lane.b32.xlu0 %v507, 104
      %v1615 = vpop.permute.xlu0 %1614
      %1616 = vrot.lane.b32.xlu0 %v508, 104
      %v1617 = vpop.permute.xlu0 %1616
      %1618 = vrot.lane.b32.xlu0 %v509, 104
      %v1619 = vpop.permute.xlu0 %1618
      %1620 = vrot.lane.b32.xlu0 %v510, 104
      %v1621 = vpop.permute.xlu0 %1620
      %1622 = vrot.lane.b32.xlu0 %v503, 72
      %v1623 = vpop.permute.xlu0 %1622
      %1624 = vrot.lane.b32.xlu0 %v504, 72
      %v1625 = vpop.permute.xlu0 %1624
      %1626 = vrot.lane.b32.xlu0 %v505, 72
      %v1627 = vpop.permute.xlu0 %1626
      %1628 = vrot.lane.b32.xlu0 %v506, 72
      %v1629 = vpop.permute.xlu0 %1628
      %1630 = vrot.lane.b32.xlu0 %v507, 72
      %v1631 = vpop.permute.xlu0 %1630
      %1632 = vrot.lane.b32.xlu0 %v508, 72
      %v1633 = vpop.permute.xlu0 %1632
      %1634 = vrot.lane.b32.xlu0 %v509, 72
      %v1635 = vpop.permute.xlu0 %1634
      %1636 = vrot.lane.b32.xlu0 %v510, 72
      %v1637 = vpop.permute.xlu0 %1636
      %v1639 = vsel %vm527, %v1607, 0
      %v1642 = vsel %vm527, %v1609, 0
      %v1645 = vsel %vm527, %v1611, 0
      %v1648 = vsel %vm527, %v1613, 0
      %v1651 = vsel %vm527, %v1615, 0
      %v1654 = vsel %vm527, %v1617, 0
      %v1657 = vsel %vm527, %v1619, 0
      %v1660 = vsel %vm527, %v1621, 0
      %v1663 = vsel %vm527, %v1623, 0
      %v1666 = vsel %vm527, %v1625, 0
      %v1669 = vsel %vm527, %v1627, 0
      %v1672 = vsel %vm527, %v1629, 0
      %v1675 = vsel %vm527, %v1631, 0
      %v1678 = vsel %vm527, %v1633, 0
      %v1681 = vsel %vm527, %v1635, 0
      %v1684 = vsel %vm527, %v1637, 0
      %1686 = vmatpush.bf16.xpose.msra.mxu0 %v1684
      %1687 = vmatpush.bf16.xpose.msra.mxu0 %v1681
      %1688 = vmatpush.bf16.xpose.msra.mxu0 %v1678
      %1689 = vmatpush.bf16.xpose.msra.mxu0 %v1675
      %1690 = vmatpush.bf16.xpose.msra.mxu0 %v1672
      %1691 = vmatpush.bf16.xpose.msra.mxu0 %v1669
      %1692 = vmatpush.bf16.xpose.msra.mxu0 %v1666
      %1693 = vmatpush.bf16.xpose.msra.mxu0 %v1663
      %1694 = vmatmul.bf16.gmra.mxu0 %v1639
      %v1695 = vpop.f32.mrf.mxu0
      %v1696 = vadd.f32 %v455, %v1695
      %v1697 = vpop.f32.mrf.mxu0
      %v1698 = vadd.f32 %v456, %v1697
      %1699 = vmatmul.bf16.gmra.mxu0 %v1642
      %v1700 = vpop.f32.mrf.mxu0
      %v1701 = vadd.f32 %v457, %v1700
      %v1702 = vpop.f32.mrf.mxu0
      %v1703 = vadd.f32 %v458, %v1702
      %1704 = vmatmul.bf16.gmra.mxu0 %v1645
      %v1705 = vpop.f32.mrf.mxu0
      %v1706 = vadd.f32 %v459, %v1705
      %v1707 = vpop.f32.mrf.mxu0
      %v1708 = vadd.f32 %v460, %v1707
      %1709 = vmatmul.bf16.gmra.mxu0 %v1648
      %v1710 = vpop.f32.mrf.mxu0
      %v1711 = vadd.f32 %v461, %v1710
      %v1712 = vpop.f32.mrf.mxu0
      %v1713 = vadd.f32 %v462, %v1712
      %1714 = vmatmul.bf16.gmra.mxu0 %v1651
      %v1715 = vpop.f32.mrf.mxu0
      %v1716 = vadd.f32 %v463, %v1715
      %v1717 = vpop.f32.mrf.mxu0
      %v1718 = vadd.f32 %v464, %v1717
      %1719 = vmatmul.bf16.gmra.mxu0 %v1654
      %v1720 = vpop.f32.mrf.mxu0
      %v1721 = vadd.f32 %v465, %v1720
      %v1722 = vpop.f32.mrf.mxu0
      %v1723 = vadd.f32 %v466, %v1722
      %1724 = vmatmul.bf16.gmra.mxu0 %v1657
      %v1725 = vpop.f32.mrf.mxu0
      %v1726 = vadd.f32 %v467, %v1725
      %v1727 = vpop.f32.mrf.mxu0
      %v1728 = vadd.f32 %v468, %v1727
      %1729 = vmatmul.bf16.gmra.mxu0 %v1660
      %v1730 = vpop.f32.mrf.mxu0
      %v1731 = vadd.f32 %v469, %v1730
      %v1732 = vpop.f32.mrf.mxu0
      %v1733 = vadd.f32 %v470, %v1732
      %1734 = vdwg.mxu0
      %1735 = vmax.xlane.f32.xlu0 %v1696
      %v1736 = vpop.xlane.xlu0 %1735
      %1737 = vmax.xlane.f32.xlu0 %v1698
      %v1738 = vpop.xlane.xlu0 %1737
      %1739 = vmax.xlane.f32.xlu0 %v1701
      %v1740 = vpop.xlane.xlu0 %1739
      %1741 = vmax.xlane.f32.xlu0 %v1703
      %v1742 = vpop.xlane.xlu0 %1741
      %1743 = vmax.xlane.f32.xlu0 %v1706
      %v1744 = vpop.xlane.xlu0 %1743
      %1745 = vmax.xlane.f32.xlu0 %v1708
      %v1746 = vpop.xlane.xlu0 %1745
      %1747 = vmax.xlane.f32.xlu0 %v1711
      %v1748 = vpop.xlane.xlu0 %1747
      %1749 = vmax.xlane.f32.xlu0 %v1713
      %v1750 = vpop.xlane.xlu0 %1749
      %1751 = vmax.xlane.f32.xlu0 %v1716
      %v1752 = vpop.xlane.xlu0 %1751
      %1753 = vmax.xlane.f32.xlu0 %v1718
      %v1754 = vpop.xlane.xlu0 %1753
      %1755 = vmax.xlane.f32.xlu0 %v1721
      %v1756 = vpop.xlane.xlu0 %1755
      %1757 = vmax.xlane.f32.xlu0 %v1723
      %v1758 = vpop.xlane.xlu0 %1757
      %1759 = vmax.xlane.f32.xlu0 %v1726
      %v1760 = vpop.xlane.xlu0 %1759
      %1761 = vmax.xlane.f32.xlu0 %v1728
      %v1762 = vpop.xlane.xlu0 %1761
      %1763 = vmax.xlane.f32.xlu0 %v1731
      %v1764 = vpop.xlane.xlu0 %1763
      %1765 = vmax.xlane.f32.xlu0 %v1733
      %v1766 = vpop.xlane.xlu0 %1765
      %v1767 = vsub.f32 %v1696, %v1736
      %v1768 = vsub.f32 %v1698, %v1738
      %v1769 = vsub.f32 %v1701, %v1740
      %v1770 = vsub.f32 %v1703, %v1742
      %v1771 = vsub.f32 %v1706, %v1744
      %v1772 = vsub.f32 %v1708, %v1746
      %v1773 = vsub.f32 %v1711, %v1748
      %v1774 = vsub.f32 %v1713, %v1750
      %v1775 = vsub.f32 %v1716, %v1752
      %v1776 = vsub.f32 %v1718, %v1754
      %v1777 = vsub.f32 %v1721, %v1756
      %v1778 = vsub.f32 %v1723, %v1758
      %v1779 = vsub.f32 %v1726, %v1760
      %v1780 = vsub.f32 %v1728, %v1762
      %v1781 = vsub.f32 %v1731, %v1764
      %v1782 = vsub.f32 %v1733, %v1766
      %v1783 = vmul.f32 %v1767, 1.442695
      %v1784 = vpow.pop %v1783
      %v1785 = vmul.f32 %v1768, 1.442695
      %v1786 = vpow.pop %v1785
      %v1787 = vmul.f32 %v1769, 1.442695
      %v1788 = vpow.pop %v1787
      %v1789 = vmul.f32 %v1770, 1.442695
      %v1790 = vpow.pop %v1789
      %v1791 = vmul.f32 %v1771, 1.442695
      %v1792 = vpow.pop %v1791
      %v1793 = vmul.f32 %v1772, 1.442695
      %v1794 = vpow.pop %v1793
      %v1795 = vmul.f32 %v1773, 1.442695
      %v1796 = vpow.pop %v1795
      %v1797 = vmul.f32 %v1774, 1.442695
      %v1798 = vpow.pop %v1797
      %v1799 = vmul.f32 %v1775, 1.442695
      %v1800 = vpow.pop %v1799
      %v1801 = vmul.f32 %v1776, 1.442695
      %v1802 = vpow.pop %v1801
      %v1803 = vmul.f32 %v1777, 1.442695
      %v1804 = vpow.pop %v1803
      %v1805 = vmul.f32 %v1778, 1.442695
      %v1806 = vpow.pop %v1805
      %v1807 = vmul.f32 %v1779, 1.442695
      %v1808 = vpow.pop %v1807
      %v1809 = vmul.f32 %v1780, 1.442695
      %v1810 = vpow.pop %v1809
      %v1811 = vmul.f32 %v1781, 1.442695
      %v1812 = vpow.pop %v1811
      %v1813 = vmul.f32 %v1782, 1.442695
      %v1814 = vpow.pop %v1813
      %1815 = vadd.xlane.f32.xlu0 %v1784
      %v1816 = vpop.xlane.xlu0 %1815
      %1817 = vadd.xlane.f32.xlu0 %v1786
      %v1818 = vpop.xlane.xlu0 %1817
      %1819 = vadd.xlane.f32.xlu0 %v1788
      %v1820 = vpop.xlane.xlu0 %1819
      %1821 = vadd.xlane.f32.xlu0 %v1790
      %v1822 = vpop.xlane.xlu0 %1821
      %1823 = vadd.xlane.f32.xlu0 %v1792
      %v1824 = vpop.xlane.xlu0 %1823
      %1825 = vadd.xlane.f32.xlu0 %v1794
      %v1826 = vpop.xlane.xlu0 %1825
      %1827 = vadd.xlane.f32.xlu0 %v1796
      %v1828 = vpop.xlane.xlu0 %1827
      %1829 = vadd.xlane.f32.xlu0 %v1798
      %v1830 = vpop.xlane.xlu0 %1829
      %1831 = vadd.xlane.f32.xlu0 %v1800
      %v1832 = vpop.xlane.xlu0 %1831
      %1833 = vadd.xlane.f32.xlu0 %v1802
      %v1834 = vpop.xlane.xlu0 %1833
      %1835 = vadd.xlane.f32.xlu0 %v1804
      %v1836 = vpop.xlane.xlu0 %1835
      %1837 = vadd.xlane.f32.xlu0 %v1806
      %v1838 = vpop.xlane.xlu0 %1837
      %1839 = vadd.xlane.f32.xlu0 %v1808
      %v1840 = vpop.xlane.xlu0 %1839
      %1841 = vadd.xlane.f32.xlu0 %v1810
      %v1842 = vpop.xlane.xlu0 %1841
      %1843 = vadd.xlane.f32.xlu0 %v1812
      %v1844 = vpop.xlane.xlu0 %1843
      %1845 = vadd.xlane.f32.xlu0 %v1814
      %v1846 = vpop.xlane.xlu0 %1845
      %v1847 = vrcp.pop %v1816
      %v1848 = vrcp.pop %v1818
      %v1849 = vrcp.pop %v1820
      %v1850 = vrcp.pop %v1822
      %v1851 = vrcp.pop %v1824
      %v1852 = vrcp.pop %v1826
      %v1853 = vrcp.pop %v1828
      %v1854 = vrcp.pop %v1830
      %v1855 = vrcp.pop %v1832
      %v1856 = vrcp.pop %v1834
      %v1857 = vrcp.pop %v1836
      %v1858 = vrcp.pop %v1838
      %v1859 = vrcp.pop %v1840
      %v1860 = vrcp.pop %v1842
      %v1861 = vrcp.pop %v1844
      %v1862 = vrcp.pop %v1846
      %v1863 = vpack.c.bf16 %v1786, %v1784
      %v1864 = vpack.c.bf16 %v1790, %v1788
      %v1865 = vpack.c.bf16 %v1794, %v1792
      %v1866 = vpack.c.bf16 %v1798, %v1796
      %v1867 = vpack.c.bf16 %v1802, %v1800
      %v1868 = vpack.c.bf16 %v1806, %v1804
      %v1869 = vpack.c.bf16 %v1810, %v1808
      %v1870 = vpack.c.bf16 %v1814, %v1812
      %1871 = vrot.lane.b32.xlu0 %v503, 40
      %v1872 = vpop.permute.xlu0 %1871
      %1873 = vrot.lane.b32.xlu0 %v504, 40
      %v1874 = vpop.permute.xlu0 %1873
      %1875 = vrot.lane.b32.xlu0 %v505, 40
      %v1876 = vpop.permute.xlu0 %1875
      %1877 = vrot.lane.b32.xlu0 %v506, 40
      %v1878 = vpop.permute.xlu0 %1877
      %1879 = vrot.lane.b32.xlu0 %v507, 40
      %v1880 = vpop.permute.xlu0 %1879
      %1881 = vrot.lane.b32.xlu0 %v508, 40
      %v1882 = vpop.permute.xlu0 %1881
      %1883 = vrot.lane.b32.xlu0 %v509, 40
      %v1884 = vpop.permute.xlu0 %1883
      %1885 = vrot.lane.b32.xlu0 %v510, 40
      %v1886 = vpop.permute.xlu0 %1885
      %1895 = vmatpush.bf16.msra.mxu0 %v1886
      %1896 = vmatpush.bf16.msra.mxu0 %v1884
      %1897 = vmatpush.bf16.msra.mxu0 %v1882
      %1898 = vmatpush.bf16.msra.mxu0 %v1880
      %1899 = vmatpush.bf16.msra.mxu0 %v1878
      %1900 = vmatpush.bf16.msra.mxu0 %v1876
      %1901 = vmatpush.bf16.msra.mxu0 %v1874
      %1902 = vmatpush.bf16.msra.mxu0 %v1872
      %1903 = vmatmul.bf16.gmra.mxu0 %v1863
      %v1904 = vpop.f32.mrf.mxu0
      %v1905 = vadd.f32 0.0, %v1904
      %v1906 = vpop.f32.mrf.mxu0
      %v1907 = vadd.f32 0.0, %v1906
      %1908 = vmatmul.bf16.gmra.mxu0 %v1864
      %v1909 = vpop.f32.mrf.mxu0
      %v1910 = vadd.f32 0.0, %v1909
      %v1911 = vpop.f32.mrf.mxu0
      %v1912 = vadd.f32 0.0, %v1911
      %1913 = vmatmul.bf16.gmra.mxu0 %v1865
      %v1914 = vpop.f32.mrf.mxu0
      %v1915 = vadd.f32 0.0, %v1914
      %v1916 = vpop.f32.mrf.mxu0
      %v1917 = vadd.f32 0.0, %v1916
      %1918 = vmatmul.bf16.gmra.mxu0 %v1866
      %v1919 = vpop.f32.mrf.mxu0
      %v1920 = vadd.f32 0.0, %v1919
      %v1921 = vpop.f32.mrf.mxu0
      %v1922 = vadd.f32 0.0, %v1921
      %1923 = vmatmul.bf16.gmra.mxu0 %v1867
      %v1924 = vpop.f32.mrf.mxu0
      %v1925 = vadd.f32 0.0, %v1924
      %v1926 = vpop.f32.mrf.mxu0
      %v1927 = vadd.f32 0.0, %v1926
      %1928 = vmatmul.bf16.gmra.mxu0 %v1868
      %v1929 = vpop.f32.mrf.mxu0
      %v1930 = vadd.f32 0.0, %v1929
      %v1931 = vpop.f32.mrf.mxu0
      %v1932 = vadd.f32 0.0, %v1931
      %1933 = vmatmul.bf16.gmra.mxu0 %v1869
      %v1934 = vpop.f32.mrf.mxu0
      %v1935 = vadd.f32 0.0, %v1934
      %v1936 = vpop.f32.mrf.mxu0
      %v1937 = vadd.f32 0.0, %v1936
      %1938 = vmatmul.bf16.gmra.mxu0 %v1870
      %v1939 = vpop.f32.mrf.mxu0
      %v1940 = vadd.f32 0.0, %v1939
      %v1941 = vpop.f32.mrf.mxu0
      %v1942 = vadd.f32 0.0, %v1941
      %1943 = vdwg.mxu0
      %v1944 = vmul.f32 %v1905, %v1847
      %v1945 = vmul.f32 %v1907, %v1848
      %v1946 = vmul.f32 %v1910, %v1849
      %v1947 = vmul.f32 %v1912, %v1850
      %v1948 = vmul.f32 %v1915, %v1851
      %v1949 = vmul.f32 %v1917, %v1852
      %v1950 = vmul.f32 %v1920, %v1853
      %v1951 = vmul.f32 %v1922, %v1854
      %v1952 = vmul.f32 %v1925, %v1855
      %v1953 = vmul.f32 %v1927, %v1856
      %v1954 = vmul.f32 %v1930, %v1857
      %v1955 = vmul.f32 %v1932, %v1858
      %v1956 = vmul.f32 %v1935, %v1859
      %v1957 = vmul.f32 %v1937, %v1860
      %v1958 = vmul.f32 %v1940, %v1861
      %v1959 = vmul.f32 %v1942, %v1862
      %v1960 = vpack.c.bf16 %v1944, %v1944
      %v1961 = vpack.c.bf16 %v1945, %v1945
      %v1962 = vpack.c.bf16 %v1946, %v1946
      %v1963 = vpack.c.bf16 %v1947, %v1947
      %v1964 = vpack.c.bf16 %v1948, %v1948
      %v1965 = vpack.c.bf16 %v1949, %v1949
      %v1966 = vpack.c.bf16 %v1950, %v1950
      %v1967 = vpack.c.bf16 %v1951, %v1951
      %v1968 = vpack.c.bf16 %v1952, %v1952
      %v1969 = vpack.c.bf16 %v1953, %v1953
      %v1970 = vpack.c.bf16 %v1954, %v1954
      %v1971 = vpack.c.bf16 %v1955, %v1955
      %v1972 = vpack.c.bf16 %v1956, %v1956
      %v1973 = vpack.c.bf16 %v1957, %v1957
      %v1974 = vpack.c.bf16 %v1958, %v1958
      %v1975 = vpack.c.bf16 %v1959, %v1959
      %v1992 = vunpack.c.l.b16 %v850
      %v1993 = vunpack.c.l.b16 %v851
      %v1994 = vunpack.c.l.b16 %v852
      %v1995 = vunpack.c.l.b16 %v853
      %v1996 = vunpack.c.l.b16 %v854
      %v1997 = vunpack.c.l.b16 %v855
      %v1998 = vunpack.c.l.b16 %v856
      %v1999 = vunpack.c.l.b16 %v857
      %v2000 = vunpack.c.l.b16 %v858
      %v2001 = vunpack.c.l.b16 %v859
      %v2002 = vunpack.c.l.b16 %v860
      %v2003 = vunpack.c.l.b16 %v861
      %v2004 = vunpack.c.l.b16 %v862
      %v2005 = vunpack.c.l.b16 %v863
      %v2006 = vunpack.c.l.b16 %v864
      %v2007 = vunpack.c.l.b16 %v865
      %v2008 = vpack.c.b16 %v1993, %v1992
      %v2009 = vpack.c.b16 %v1995, %v1994
      %v2010 = vpack.c.b16 %v1997, %v1996
      %v2011 = vpack.c.b16 %v1999, %v1998
      %v2012 = vpack.c.b16 %v2001, %v2000
      %v2013 = vpack.c.b16 %v2003, %v2002
      %v2014 = vpack.c.b16 %v2005, %v2004
      %v2015 = vpack.c.b16 %v2007, %v2006
      %v2032 = vunpack.c.l.b16 %v1220
      %v2033 = vunpack.c.l.b16 %v1221
      %v2034 = vunpack.c.l.b16 %v1222
      %v2035 = vunpack.c.l.b16 %v1223
      %v2036 = vunpack.c.l.b16 %v1224
      %v2037 = vunpack.c.l.b16 %v1225
      %v2038 = vunpack.c.l.b16 %v1226
      %v2039 = vunpack.c.l.b16 %v1227
      %v2040 = vunpack.c.l.b16 %v1228
      %v2041 = vunpack.c.l.b16 %v1229
      %v2042 = vunpack.c.l.b16 %v1230
      %v2043 = vunpack.c.l.b16 %v1231
      %v2044 = vunpack.c.l.b16 %v1232
      %v2045 = vunpack.c.l.b16 %v1233
      %v2046 = vunpack.c.l.b16 %v1234
      %v2047 = vunpack.c.l.b16 %v1235
      %v2048 = vpack.c.b16 %v2033, %v2032
      %v2049 = vpack.c.b16 %v2035, %v2034
      %v2050 = vpack.c.b16 %v2037, %v2036
      %v2051 = vpack.c.b16 %v2039, %v2038
      %v2052 = vpack.c.b16 %v2041, %v2040
      %v2053 = vpack.c.b16 %v2043, %v2042
      %v2054 = vpack.c.b16 %v2045, %v2044
      %v2055 = vpack.c.b16 %v2047, %v2046
      %2056 = vrot.lane.b32.xlu0 %v2048, 8
      %v2057 = vpop.permute.xlu0 %2056
      %2058 = vrot.lane.b32.xlu0 %v2049, 8
      %v2059 = vpop.permute.xlu0 %2058
      %2060 = vrot.lane.b32.xlu0 %v2050, 8
      %v2061 = vpop.permute.xlu0 %2060
      %2062 = vrot.lane.b32.xlu0 %v2051, 8
      %v2063 = vpop.permute.xlu0 %2062
      %2064 = vrot.lane.b32.xlu0 %v2052, 8
      %v2065 = vpop.permute.xlu0 %2064
      %2066 = vrot.lane.b32.xlu0 %v2053, 8
      %v2067 = vpop.permute.xlu0 %2066
      %2068 = vrot.lane.b32.xlu0 %v2054, 8
      %v2069 = vpop.permute.xlu0 %2068
      %2070 = vrot.lane.b32.xlu0 %v2055, 8
      %v2071 = vpop.permute.xlu0 %2070
      %v2088 = vunpack.c.l.b16 %v1590
      %v2089 = vunpack.c.l.b16 %v1591
      %v2090 = vunpack.c.l.b16 %v1592
      %v2091 = vunpack.c.l.b16 %v1593
      %v2092 = vunpack.c.l.b16 %v1594
      %v2093 = vunpack.c.l.b16 %v1595
      %v2094 = vunpack.c.l.b16 %v1596
      %v2095 = vunpack.c.l.b16 %v1597
      %v2096 = vunpack.c.l.b16 %v1598
      %v2097 = vunpack.c.l.b16 %v1599
      %v2098 = vunpack.c.l.b16 %v1600
      %v2099 = vunpack.c.l.b16 %v1601
      %v2100 = vunpack.c.l.b16 %v1602
      %v2101 = vunpack.c.l.b16 %v1603
      %v2102 = vunpack.c.l.b16 %v1604
      %v2103 = vunpack.c.l.b16 %v1605
      %v2104 = vpack.c.b16 %v2089, %v2088
      %v2105 = vpack.c.b16 %v2091, %v2090
      %v2106 = vpack.c.b16 %v2093, %v2092
      %v2107 = vpack.c.b16 %v2095, %v2094
      %v2108 = vpack.c.b16 %v2097, %v2096
      %v2109 = vpack.c.b16 %v2099, %v2098
      %v2110 = vpack.c.b16 %v2101, %v2100
      %v2111 = vpack.c.b16 %v2103, %v2102
      %2112 = vrot.lane.b32.xlu0 %v2104, 16
      %v2113 = vpop.permute.xlu0 %2112
      %2114 = vrot.lane.b32.xlu0 %v2105, 16
      %v2115 = vpop.permute.xlu0 %2114
      %2116 = vrot.lane.b32.xlu0 %v2106, 16
      %v2117 = vpop.permute.xlu0 %2116
      %2118 = vrot.lane.b32.xlu0 %v2107, 16
      %v2119 = vpop.permute.xlu0 %2118
      %2120 = vrot.lane.b32.xlu0 %v2108, 16
      %v2121 = vpop.permute.xlu0 %2120
      %2122 = vrot.lane.b32.xlu0 %v2109, 16
      %v2123 = vpop.permute.xlu0 %2122
      %2124 = vrot.lane.b32.xlu0 %v2110, 16
      %v2125 = vpop.permute.xlu0 %2124
      %2126 = vrot.lane.b32.xlu0 %v2111, 16
      %v2127 = vpop.permute.xlu0 %2126
      %v2144 = vunpack.c.l.b16 %v1960
      %v2145 = vunpack.c.l.b16 %v1961
      %v2146 = vunpack.c.l.b16 %v1962
      %v2147 = vunpack.c.l.b16 %v1963
      %v2148 = vunpack.c.l.b16 %v1964
      %v2149 = vunpack.c.l.b16 %v1965
      %v2150 = vunpack.c.l.b16 %v1966
      %v2151 = vunpack.c.l.b16 %v1967
      %v2152 = vunpack.c.l.b16 %v1968
      %v2153 = vunpack.c.l.b16 %v1969
      %v2154 = vunpack.c.l.b16 %v1970
      %v2155 = vunpack.c.l.b16 %v1971
      %v2156 = vunpack.c.l.b16 %v1972
      %v2157 = vunpack.c.l.b16 %v1973
      %v2158 = vunpack.c.l.b16 %v1974
      %v2159 = vunpack.c.l.b16 %v1975
      %v2160 = vpack.c.b16 %v2145, %v2144
      %v2161 = vpack.c.b16 %v2147, %v2146
      %v2162 = vpack.c.b16 %v2149, %v2148
      %v2163 = vpack.c.b16 %v2151, %v2150
      %v2164 = vpack.c.b16 %v2153, %v2152
      %v2165 = vpack.c.b16 %v2155, %v2154
      %v2166 = vpack.c.b16 %v2157, %v2156
      %v2167 = vpack.c.b16 %v2159, %v2158
      %2168 = vrot.lane.b32.xlu0 %v2160, 24
      %v2169 = vpop.permute.xlu0 %2168
      %2170 = vrot.lane.b32.xlu0 %v2161, 24
      %v2171 = vpop.permute.xlu0 %2170
      %2172 = vrot.lane.b32.xlu0 %v2162, 24
      %v2173 = vpop.permute.xlu0 %2172
      %2174 = vrot.lane.b32.xlu0 %v2163, 24
      %v2175 = vpop.permute.xlu0 %2174
      %2176 = vrot.lane.b32.xlu0 %v2164, 24
      %v2177 = vpop.permute.xlu0 %2176
      %2178 = vrot.lane.b32.xlu0 %v2165, 24
      %v2179 = vpop.permute.xlu0 %2178
      %2180 = vrot.lane.b32.xlu0 %v2166, 24
      %v2181 = vpop.permute.xlu0 %2180
      %2182 = vrot.lane.b32.xlu0 %v2167, 24
      %v2183 = vpop.permute.xlu0 %2182
      %v2186 = vsel %vm527, %v2008, %v2057
      %v2189 = vsel %vm527, %v2009, %v2059
      %v2192 = vsel %vm527, %v2010, %v2061
      %v2195 = vsel %vm527, %v2011, %v2063
      %v2198 = vsel %vm527, %v2012, %v2065
      %v2201 = vsel %vm527, %v2013, %v2067
      %v2204 = vsel %vm527, %v2014, %v2069
      %v2207 = vsel %vm527, %v2015, %v2071
      %vm2208 = vcmask 130048
      %v2210 = vsel %vm2208, %v2186, %v2113
      %v2212 = vsel %vm2208, %v2189, %v2115
      %v2214 = vsel %vm2208, %v2192, %v2117
      %v2216 = vsel %vm2208, %v2195, %v2119
      %v2218 = vsel %vm2208, %v2198, %v2121
      %v2220 = vsel %vm2208, %v2201, %v2123
      %v2222 = vsel %vm2208, %v2204, %v2125
      %v2224 = vsel %vm2208, %v2207, %v2127
      %vm2225 = vcmask 195584
      %v2227 = vsel %vm2225, %v2210, %v2169
      %v2229 = vsel %vm2225, %v2212, %v2171
      %v2231 = vsel %vm2225, %v2214, %v2173
      %v2233 = vsel %vm2225, %v2216, %v2175
      %v2235 = vsel %vm2225, %v2218, %v2177
      %v2237 = vsel %vm2225, %v2220, %v2179
      %v2239 = vsel %vm2225, %v2222, %v2181
      %v2241 = vsel %vm2225, %v2224, %v2183
      %v2250 = vunpack.c.l.b16 %v2227
      %v2251 = vunpack.c.h.b16 %v2227
      %v2252 = vunpack.c.l.b16 %v2229
      %v2253 = vunpack.c.h.b16 %v2229
      %v2254 = vunpack.c.l.b16 %v2231
      %v2255 = vunpack.c.h.b16 %v2231
      %v2256 = vunpack.c.l.b16 %v2233
      %v2257 = vunpack.c.h.b16 %v2233
      %v2258 = vunpack.c.l.b16 %v2235
      %v2259 = vunpack.c.h.b16 %v2235
      %v2260 = vunpack.c.l.b16 %v2237
      %v2261 = vunpack.c.h.b16 %v2237
      %v2262 = vunpack.c.l.b16 %v2239
      %v2263 = vunpack.c.h.b16 %v2239
      %v2264 = vunpack.c.l.b16 %v2241
      %v2265 = vunpack.c.h.b16 %v2241
      %v2266 = vpack.c.b16 %v2250, %v2250
      %v2267 = vpack.c.b16 %v2251, %v2251
      %v2268 = vpack.c.b16 %v2252, %v2252
      %v2269 = vpack.c.b16 %v2253, %v2253
      %v2270 = vpack.c.b16 %v2254, %v2254
      %v2271 = vpack.c.b16 %v2255, %v2255
      %v2272 = vpack.c.b16 %v2256, %v2256
      %v2273 = vpack.c.b16 %v2257, %v2257
      %v2274 = vpack.c.b16 %v2258, %v2258
      %v2275 = vpack.c.b16 %v2259, %v2259
      %v2276 = vpack.c.b16 %v2260, %v2260
      %v2277 = vpack.c.b16 %v2261, %v2261
      %v2278 = vpack.c.b16 %v2262, %v2262
      %v2279 = vpack.c.b16 %v2263, %v2263
      %v2280 = vpack.c.b16 %v2264, %v2264
      %v2281 = vpack.c.b16 %v2265, %v2265
      %vm2298 = vcmask 257024
      %2299 = vst.msk [vmem:[#allocation3] sm:$0xf] %vm2298, %v2266
      %2300 = vst.msk [vmem:[#allocation3 + $0x4] sm:$0xf] %vm2298, %v2267
      %2301 = vst.msk [vmem:[#allocation3 + $0x8] sm:$0xf] %vm2298, %v2268
      %2302 = vst.msk [vmem:[#allocation3 + $0xc] sm:$0xf] %vm2298, %v2269
      %2303 = vst.msk [vmem:[#allocation3 + $0x10] sm:$0xf] %vm2298, %v2270
      %2304 = vst.msk [vmem:[#allocation3 + $0x14] sm:$0xf] %vm2298, %v2271
      %2305 = vst.msk [vmem:[#allocation3 + $0x18] sm:$0xf] %vm2298, %v2272
      %2306 = vst.msk [vmem:[#allocation3 + $0x1c] sm:$0xf] %vm2298, %v2273
      %2307 = vst.msk [vmem:[#allocation3 + $0x20] sm:$0xf] %vm2298, %v2274
      %2308 = vst.msk [vmem:[#allocation3 + $0x24] sm:$0xf] %vm2298, %v2275
      %2309 = vst.msk [vmem:[#allocation3 + $0x28] sm:$0xf] %vm2298, %v2276
      %2310 = vst.msk [vmem:[#allocation3 + $0x2c] sm:$0xf] %vm2298, %v2277
      %2311 = vst.msk [vmem:[#allocation3 + $0x30] sm:$0xf] %vm2298, %v2278
      %2312 = vst.msk [vmem:[#allocation3 + $0x34] sm:$0xf] %vm2298, %v2279
      %2313 = vst.msk [vmem:[#allocation3 + $0x38] sm:$0xf] %vm2298, %v2280
      %2314 = vst.msk [vmem:[#allocation3 + $0x3c] sm:$0xf] %vm2298, %v2281
      %v2315 = vld [vmem:[#allocation3] sm:$0xf]
      %v2316 = vld [vmem:[#allocation3 + $0x4] sm:$0xf]
      %v2317 = vld [vmem:[#allocation3 + $0x8] sm:$0xf]
      %v2318 = vld [vmem:[#allocation3 + $0xc] sm:$0xf]
      %v2319 = vld [vmem:[#allocation3 + $0x10] sm:$0xf]
      %v2320 = vld [vmem:[#allocation3 + $0x14] sm:$0xf]
      %v2321 = vld [vmem:[#allocation3 + $0x18] sm:$0xf]
      %v2322 = vld [vmem:[#allocation3 + $0x1c] sm:$0xf]
      %v2323 = vld [vmem:[#allocation3 + $0x20] sm:$0xf]
      %v2324 = vld [vmem:[#allocation3 + $0x24] sm:$0xf]
      %v2325 = vld [vmem:[#allocation3 + $0x28] sm:$0xf]
      %v2326 = vld [vmem:[#allocation3 + $0x2c] sm:$0xf]
      %v2327 = vld [vmem:[#allocation3 + $0x30] sm:$0xf]
      %v2328 = vld [vmem:[#allocation3 + $0x34] sm:$0xf]
      %v2329 = vld [vmem:[#allocation3 + $0x38] sm:$0xf]
      %v2330 = vld [vmem:[#allocation3 + $0x3c] sm:$0xf]
      %v2331 = vld [vmem:[%s3] sm:$0xf]
      %v2332 = vld [vmem:[%s3 + $0x4] sm:$0xf]
      %v2333 = vld [vmem:[%s3 + $0x8] sm:$0xf]
      %v2334 = vld [vmem:[%s3 + $0xc] sm:$0xf]
      %v2335 = vld [vmem:[%s4] sm:$0x1]
      %v2337 = vperm.slane %v2335, 0
      %v2355 = vunpack.c.l.b16 %v2315
      %v2356 = vunpack.c.l.b16 %v2316
      %v2357 = vunpack.c.l.b16 %v2317
      %v2358 = vunpack.c.l.b16 %v2318
      %v2359 = vunpack.c.l.b16 %v2319
      %v2360 = vunpack.c.l.b16 %v2320
      %v2361 = vunpack.c.l.b16 %v2321
      %v2362 = vunpack.c.l.b16 %v2322
      %v2363 = vunpack.c.l.b16 %v2323
      %v2364 = vunpack.c.l.b16 %v2324
      %v2365 = vunpack.c.l.b16 %v2325
      %v2366 = vunpack.c.l.b16 %v2326
      %v2367 = vunpack.c.l.b16 %v2327
      %v2368 = vunpack.c.l.b16 %v2328
      %v2369 = vunpack.c.l.b16 %v2329
      %v2370 = vunpack.c.l.b16 %v2330
      %v2371 = vpack.c.b16 %v2356, %v2355
      %v2372 = vpack.c.b16 %v2358, %v2357
      %v2373 = vpack.c.b16 %v2360, %v2359
      %v2374 = vpack.c.b16 %v2362, %v2361
      %v2375 = vpack.c.b16 %v2364, %v2363
      %v2376 = vpack.c.b16 %v2366, %v2365
      %v2377 = vpack.c.b16 %v2368, %v2367
      %v2378 = vpack.c.b16 %v2370, %v2369
      %v2383 = vunpack.c.l.b16 %v2331
      %v2384 = vunpack.c.l.b16 %v2332
      %v2385 = vunpack.c.l.b16 %v2333
      %v2386 = vunpack.c.l.b16 %v2334
      %v2387 = vpack.c.b16 %v2384, %v2383
      %v2388 = vpack.c.b16 %v2386, %v2385
      %v2392 = vsel %vm332, %v2371, 0
      %v2395 = vsel %vm332, %v2372, 0
      %v2398 = vsel %vm332, %v2373, 0
      %v2401 = vsel %vm332, %v2374, 0
      %v2404 = vsel %vm332, %v2375, 0
      %v2407 = vsel %vm332, %v2376, 0
      %v2410 = vsel %vm332, %v2377, 0
      %v2413 = vsel %vm332, %v2378, 0
      %2415 = vmatpush.bf16.msra.mxu0 0
      %2416 = vmatpush.bf16.msra.mxu0 0
      %2417 = vmatpush.bf16.msra.mxu0 0
      %2418 = vmatpush.bf16.msra.mxu0 0
      %2419 = vmatpush.bf16.msra.mxu0 0
      %2420 = vmatpush.bf16.msra.mxu0 0
      %2421 = vmatpush.bf16.msra.mxu0 %v2388
      %2422 = vmatpush.bf16.msra.mxu0 %v2387
      %2423 = vmatmul.bf16.gmra.mxu0 %v2392
      %v2424 = vpop.f32.mrf.mxu0
      %v2425 = vadd.f32 %v2337, %v2424
      %v2426 = vpop.f32.mrf.mxu0
      %v2427 = vadd.f32 %v2337, %v2426
      %2428 = vmatmul.bf16.gmra.mxu0 %v2395
      %v2429 = vpop.f32.mrf.mxu0
      %v2430 = vadd.f32 %v2337, %v2429
      %v2431 = vpop.f32.mrf.mxu0
      %v2432 = vadd.f32 %v2337, %v2431
      %2433 = vmatmul.bf16.gmra.mxu0 %v2398
      %v2434 = vpop.f32.mrf.mxu0
      %v2435 = vadd.f32 %v2337, %v2434
      %v2436 = vpop.f32.mrf.mxu0
      %v2437 = vadd.f32 %v2337, %v2436
      %2438 = vmatmul.bf16.gmra.mxu0 %v2401
      %v2439 = vpop.f32.mrf.mxu0
      %v2440 = vadd.f32 %v2337, %v2439
      %v2441 = vpop.f32.mrf.mxu0
      %v2442 = vadd.f32 %v2337, %v2441
      %2443 = vmatmul.bf16.gmra.mxu0 %v2404
      %v2444 = vpop.f32.mrf.mxu0
      %v2445 = vadd.f32 %v2337, %v2444
      %v2446 = vpop.f32.mrf.mxu0
      %v2447 = vadd.f32 %v2337, %v2446
      %2448 = vmatmul.bf16.gmra.mxu0 %v2407
      %v2449 = vpop.f32.mrf.mxu0
      %v2450 = vadd.f32 %v2337, %v2449
      %v2451 = vpop.f32.mrf.mxu0
      %v2452 = vadd.f32 %v2337, %v2451
      %2453 = vmatmul.bf16.gmra.mxu0 %v2410
      %v2454 = vpop.f32.mrf.mxu0
      %v2455 = vadd.f32 %v2337, %v2454
      %v2456 = vpop.f32.mrf.mxu0
      %v2457 = vadd.f32 %v2337, %v2456
      %2458 = vmatmul.bf16.gmra.mxu0 %v2413
      %v2459 = vpop.f32.mrf.mxu0
      %v2460 = vadd.f32 %v2337, %v2459
      %v2461 = vpop.f32.mrf.mxu0
      %v2462 = vadd.f32 %v2337, %v2461
      %2463 = vdwg.mxu0
      %2464 = vst.msk [vmem:[%s253] sm:$0xff] %vm332, %v2425
      %2465 = vst.msk [vmem:[%s253 + $0x8] sm:$0xff] %vm332, %v2427
      %2466 = vst.msk [vmem:[%s253 + $0x10] sm:$0xff] %vm332, %v2430
      %2467 = vst.msk [vmem:[%s253 + $0x18] sm:$0xff] %vm332, %v2432
      %2468 = vst.msk [vmem:[%s253 + $0x20] sm:$0xff] %vm332, %v2435
      %2469 = vst.msk [vmem:[%s253 + $0x28] sm:$0xff] %vm332, %v2437
      %2470 = vst.msk [vmem:[%s253 + $0x30] sm:$0xff] %vm332, %v2440
      %2471 = vst.msk [vmem:[%s253 + $0x38] sm:$0xff] %vm332, %v2442
      %2472 = vst.msk [vmem:[%s253 + $0x40] sm:$0xff] %vm332, %v2445
      %2473 = vst.msk [vmem:[%s253 + $0x48] sm:$0xff] %vm332, %v2447
      %2474 = vst.msk [vmem:[%s253 + $0x50] sm:$0xff] %vm332, %v2450
      %2475 = vst.msk [vmem:[%s253 + $0x58] sm:$0xff] %vm332, %v2452
      %2476 = vst.msk [vmem:[%s253 + $0x60] sm:$0xff] %vm332, %v2455
      %2477 = vst.msk [vmem:[%s253 + $0x68] sm:$0xff] %vm332, %v2457
      %2478 = vst.msk [vmem:[%s253 + $0x70] sm:$0xff] %vm332, %v2460
      %2479 = vst.msk [vmem:[%s253 + $0x78] sm:$0xff] %vm332, %v2462
      %s2480 = smul.u32 16, %s17
      %p2481 = scmp.lt.s32.totalorder %s2480, 31
      %s2482 = scalar_select %p2481, %s2480, 31
      %s2483 = smul.addr %s2482, 8
      %s2484 = scalar_lea.vmem %s6, %s2483
      // Predicated region
      $region45: #{tpu_custom_call.1} parent=43 // pred_check
        %p2485 = pneg %p166
      $region46: #{tpu_custom_call.1} parent=43 // pred_check_branch
        %2487 = sbr.rel (%p2485) target = $region48
      $region47: #{tpu_custom_call.1} parent=43 // pred_region
        %s2488 = smul.u32 16, %s17
      $region48: #{tpu_custom_call.1} parent=43 // pred_fallthru
        _
    $region44: #{tpu_custom_call.1} parent=5 // pred_fallthru
      _
    %p2489 = scmp.le.s32.totalorder 2, %s12
    // Predicated region
    $region49: #{tpu_custom_call.1} parent=5 // pred_check
      %p2490 = pneg %p2489
    $region50: #{tpu_custom_call.1} parent=5 // pred_check_branch
      %2492 = sbr.rel (%p2490) target = $region52
    $region51: #{tpu_custom_call.1} parent=5 // pred_region
      %s2493 = ssub.s32 %s12, 2
      // Predicated region
      $region53: #{tpu_custom_call.1} parent=51 // pred_check
        %p2494 = pneg %p172
      $region54: #{tpu_custom_call.1} parent=51 // pred_check_branch
        %2496 = sbr.rel (%p2494) target = $region56
      $region55: #{tpu_custom_call.1} parent=51 // pred_region
        %s2497 = smul.u32 16, %s18
        %p2498 = scmp.lt.s32.totalorder %s2497, 31
        %s2499 = scalar_select %p2498, %s2497, 31
        %s2500 = smul.addr %s2499, 8
        %s2501 = scalar_lea.vmem %s6, %s2500
      $region56: #{tpu_custom_call.1} parent=51 // pred_fallthru
        _
    $region52: #{tpu_custom_call.1} parent=5 // pred_fallthru
      _
  $region6: #{tpu_custom_call.1} parent=0 // loop_footer
    %s16 = sadd.s32 1, %s12
  $region7: #{tpu_custom_call.1} parent=0 // loop_footer_branch
    %11 = sbr.rel target = $region3
  $region8: #{tpu_custom_call.1} parent=0 // loop_exit
    _

</llo_original>
